<compile_context>
chip_gen: v7x
topology: tpu7x:2x2x1
jax: 0.10.0
libtpu: 0.0.40
codegen_flags: <defaults>
</compile_context>

<pallas_src>
import functools
import math

import jax
import jax.numpy as jnp
from jax.experimental import pallas as pl
from jax.experimental.pallas import tpu as pltpu

NEG_SLOPE = 0.01   # PyTorch nn.LeakyReLU default negative_slope
LN_EPS = 1e-5      # PyTorch nn.LayerNorm default eps

CHANNELS = 106     # hard-coded in Convformer.__init__
C_OUT = 7
IMU_LEN = 7        # conv window
AU_LEN = 7         # sequence length seen by the encoder
D_MODEL = 32
N_HEADS = 4
D_FF = 64
OUT_PAD = 64       # lane padding for each c_out=7 head -> one 128-wide output slab
K_PAD = 768        # im2col K (= IMU_LEN*CHANNELS = 742) padded to a multiple of 128

# Packing invariants for the small-weight slab (all hold for this config):
#   3*D_MODEL + D_MODEL == 128, D_FF + OUT_PAD == 128, 2*D_MODEL + D_FF == 128
assert 3 * D_MODEL + D_MODEL == 128 and D_FF + OUT_PAD == 128 and 2 * D_MODEL + D_FF == 128


# --------------------------------------------------------------------------
# Fused Pallas kernel: whole Convformer forward for ONE batch element,
# everything VMEM-resident.  Weights arrive as 4 packed slabs.
# --------------------------------------------------------------------------
def _convformer_kernel(
    x_ref,        # (L, K_PAD)  f32   im2col input for this batch element
    conv_w_ref,   # (K_PAD, 128) bf16 conv weight (cols 106:128 zero)
    w2_ref,       # (128, 128)  bf16  [fc2_w | emb_w | 0] (rows 106:128 zero)
    ws_ref,       # (128, 128)  bf16  packed: qkv|wo (rows 0:32), ff1|proj (32:64), ff2 (64:128)
    fv_ref,       # (16, 128)   f32   packed biases / LN affine / positional encoding
    out12_ref,    # (L, 128)    f32   [fc2 branch 0:64 | projection branch 64:128]
    attn_ref,     # (H, L, L)   f32   attention weights for this batch element
    *, n_heads, d_head, au_len):
  f32 = jnp.float32
  bf16 = jnp.bfloat16
  D = n_heads * d_head
  F = D_FF
  L = au_len

  fv = fv_ref[...]            # (16, 128) f32, loaded once
  ws = ws_ref[...]            # (128, 128) bf16, loaded once

  def leaky(y):
    return jnp.where(y >= 0.0, y, NEG_SLOPE * y)

  def layernorm(y, g, b):
    mu = jnp.mean(y, axis=-1, keepdims=True)
    var = jnp.mean(jnp.square(y - mu), axis=-1, keepdims=True)
    return (y - mu) * jax.lax.rsqrt(var + LN_EPS) * g + b

  # ---- ConvBlock: all L conv steps as one im2col matmul + LeakyReLU ----
  x = x_ref[...]                                                   # (L, K_PAD)
  feat = jnp.dot(x.astype(bf16), conv_w_ref[...],
                 preferred_element_type=f32)
  feat = leaky(feat + fv[0:1, :])                                  # (L, 128) (cols 106:128 = 0)

  # ---- fused fc2 + embedding matmul ----
  y2 = jnp.dot(feat.astype(bf16), w2_ref[...],
               preferred_element_type=f32) + fv[1:2, :]            # (L, 128)
  out1 = leaky(y2[:, 0:OUT_PAD])                                   # fc2 branch (L, 64)
  h = y2[:, OUT_PAD:OUT_PAD + D] + fv[8:8 + L, 0:D]                # embed + positional (L, D)

  # ---- fused q/k/v projection (1/sqrt(d_head) pre-folded into Q cols) ----
  y3 = jnp.dot(h.astype(bf16), ws[0:D, :], preferred_element_type=f32)   # (L, 128)
  qkv = y3[:, 0:3 * D] + fv[2:3, 0:3 * D]
  q = qkv[:, 0:D]
  k = qkv[:, D:2 * D]
  v = qkv[:, 2 * D:3 * D]

  # ---- head-batched self-attention (one softmax, one store, no mask) ----
  dh = d_head
  qs = jnp.stack([q[:, hh * dh:(hh + 1) * dh] for hh in range(n_heads)], 0).astype(bf16)
  ks = jnp.stack([k[:, hh * dh:(hh + 1) * dh] for hh in range(n_heads)], 0).astype(bf16)
  vs = jnp.stack([v[:, hh * dh:(hh + 1) * dh] for hh in range(n_heads)], 0).astype(bf16)
  s = jnp.einsum("hqd,hkd->hqk", qs, ks, preferred_element_type=f32)     # (H, L, L)
  m = jnp.max(s, axis=-1, keepdims=True)
  e = jnp.exp(s - m)
  p = e / jnp.sum(e, axis=-1, keepdims=True)        # exact softmax (attn is returned)
  attn_ref[...] = p.astype(attn_ref.dtype)
  ctx = jnp.einsum("hqk,hkd->hqd", p.astype(bf16), vs,
                   preferred_element_type=f32)                           # (H, L, dh)
  ctx2 = jnp.concatenate([ctx[hh] for hh in range(n_heads)], axis=-1)    # (L, D)

  mha = jnp.dot(ctx2.astype(bf16), ws[0:D, 3 * D:4 * D],
                preferred_element_type=f32) + fv[2:3, 3 * D:4 * D]
  h1 = layernorm(mha + h, fv[3:4, 0:D], fv[3:4, D:2 * D])

  # ---- FFN + residual + LayerNorm ----
  ff = jnp.dot(h1.astype(bf16), ws[D:2 * D, 0:F],
               preferred_element_type=f32) + fv[4:5, 0:F]
  ff = jnp.maximum(ff, 0.0)
  ff = jnp.dot(ff.astype(bf16), ws[2 * D:2 * D + F, 0:D],
               preferred_element_type=f32) + fv[5:6, 0:D]
  h2 = layernorm(ff + h1, fv[3:4, 2 * D:3 * D], fv[3:4, 3 * D:4 * D])

  # ---- projection branch ----
  out2 = jnp.dot(h2.astype(bf16), ws[D:2 * D, F:F + OUT_PAD],
                 preferred_element_type=f32) + fv[4:5, F:F + OUT_PAD]    # (L, 64)

  # single lane-dense (L, 128) store
  out12_ref[...] = jnp.concatenate([out1, out2], axis=-1).astype(out12_ref.dtype)


# --------------------------------------------------------------------------
# Parameter init (deterministic synthetic) + one-time packing / relayout
# --------------------------------------------------------------------------
def sinusoidal_pe(length, d_model):
  pos = jnp.arange(length, dtype=jnp.float32)[:, None]
  i = jnp.arange(d_model // 2, dtype=jnp.float32)[None, :]
  angles = pos / jnp.power(10000.0, 2.0 * i / d_model)
  pe = jnp.zeros((length, d_model), dtype=jnp.float32)
  pe = pe.at[:, 0::2].set(jnp.sin(angles))
  pe = pe.at[:, 1::2].set(jnp.cos(angles))
  return pe


def init_params(key):
  ks = jax.random.split(key, 16)
  s = 0.02
  p = {
      # ConvBlock: Conv1d(106, 106, kernel_size=IMU_LEN), torch layout (Cout, Cin, W)
      "conv_w": s * jax.random.normal(ks[0], (CHANNELS, CHANNELS, IMU_LEN)),
      "conv_b": s * jax.random.normal(ks[1], (CHANNELS,)),
      # fc2: Linear(106, c_out)
      "fc2_w": s * jax.random.normal(ks[2], (CHANNELS, C_OUT)),
      "fc2_b": s * jax.random.normal(ks[3], (C_OUT,)),
      # Encoder input embedding: Linear(106, d_model)
      "emb_w": s * jax.random.normal(ks[4], (CHANNELS, D_MODEL)),
      "emb_b": s * jax.random.normal(ks[5], (D_MODEL,)),
      "pos": sinusoidal_pe(AU_LEN, D_MODEL),
      # Multi-head self-attention projections
      "wq": s * jax.random.normal(ks[6], (D_MODEL, D_MODEL)), "bq": jnp.zeros((D_MODEL,)),
      "wk": s * jax.random.normal(ks[7], (D_MODEL, D_MODEL)), "bk": jnp.zeros((D_MODEL,)),
      "wv": s * jax.random.normal(ks[8], (D_MODEL, D_MODEL)), "bv": jnp.zeros((D_MODEL,)),
      "wo": s * jax.random.normal(ks[9], (D_MODEL, D_MODEL)), "bo": jnp.zeros((D_MODEL,)),
      "ln1_g": jnp.ones((D_MODEL,)), "ln1_b": jnp.zeros((D_MODEL,)),
      "ln2_g": jnp.ones((D_MODEL,)), "ln2_b": jnp.zeros((D_MODEL,)),
      # FFN
      "ff1_w": s * jax.random.normal(ks[10], (D_MODEL, D_FF)), "ff1_b": jnp.zeros((D_FF,)),
      "ff2_w": s * jax.random.normal(ks[11], (D_FF, D_MODEL)), "ff2_b": jnp.zeros((D_MODEL,)),
      # projection: Linear(d_model, c_out)
      "proj_w": s * jax.random.normal(ks[12], (D_MODEL, C_OUT)),
      "proj_b": s * jax.random.normal(ks[13], (C_OUT,)),
  }
  return {k: v.astype(jnp.float32) for k, v in p.items()}


def prepare_params(p):
  """One-time packing of all parameters into 4 lane-dense VMEM slabs."""
  C, W, D, F = CHANNELS, IMU_LEN, D_MODEL, D_FF
  dh = D // N_HEADS

  # conv weight (Cout, Cin, W) -> (W*Cin, Cout), matching (w, c) im2col column
  # order, K padded to 768, output lanes padded to 128.
  conv_w = jnp.transpose(p["conv_w"], (2, 1, 0)).reshape(W * C, C)
  conv_w_p = jnp.zeros((K_PAD, 128), jnp.float32).at[:W * C, :C].set(conv_w)

  # fused fc2 | embed weight: (128, 128), input rows 106:128 zero
  w2 = jnp.zeros((128, 128), jnp.float32)
  w2 = w2.at[:C, 0:C_OUT].set(p["fc2_w"])
  w2 = w2.at[:C, OUT_PAD:OUT_PAD + D].set(p["emb_w"])

  # fused q/k/v projection with the attention scale folded into the Q columns
  scale = 1.0 / math.sqrt(dh)
  qkv_w = jnp.concatenate([p["wq"] * scale, p["wk"], p["wv"]], axis=1)   # (D, 3D)
  qkv_b = jnp.concatenate([p["bq"] * scale, p["bk"], p["bv"]])           # (3D,)

  # packed small-weight slab (128, 128)
  ws = jnp.zeros((128, 128), jnp.float32)
  ws = ws.at[0:D, 0:3 * D].set(qkv_w)                 # qkv
  ws = ws.at[0:D, 3 * D:4 * D].set(p["wo"])           # attention output proj
  ws = ws.at[D:2 * D, 0:F].set(p["ff1_w"])            # FFN in
  ws = ws.at[D:2 * D, F:F + C_OUT].set(p["proj_w"])   # final projection (lane-padded)
  ws = ws.at[2 * D:2 * D + F, 0:D].set(p["ff2_w"])    # FFN out

  # packed f32 slab: biases, LN affine, positional encoding
  fv = jnp.zeros((16, 128), jnp.float32)
  fv = fv.at[0, :C].set(p["conv_b"])
  fv = fv.at[1, 0:C_OUT].set(p["fc2_b"])
  fv = fv.at[1, OUT_PAD:OUT_PAD + D].set(p["emb_b"])
  fv = fv.at[2, 0:3 * D].set(qkv_b)
  fv = fv.at[2, 3 * D:4 * D].set(p["bo"])
  fv = fv.at[3, 0:D].set(p["ln1_g"])
  fv = fv.at[3, D:2 * D].set(p["ln1_b"])
  fv = fv.at[3, 2 * D:3 * D].set(p["ln2_g"])
  fv = fv.at[3, 3 * D:4 * D].set(p["ln2_b"])
  fv = fv.at[4, 0:F].set(p["ff1_b"])
  fv = fv.at[4, F:F + C_OUT].set(p["proj_b"])
  fv = fv.at[5, 0:D].set(p["ff2_b"])
  fv = fv.at[8:8 + AU_LEN, 0:D].set(p["pos"])         # positional encoding (L, D)

  return dict(conv_w=conv_w_p.astype(jnp.bfloat16),
              w2=w2.astype(jnp.bfloat16),
              ws=ws.astype(jnp.bfloat16),
              fvec=fv)


# --------------------------------------------------------------------------
# Forward pass: one pallas_call with a parallel per-batch grid
# --------------------------------------------------------------------------
def convformer_forward(x, prep):
  B, L, W, C = x.shape
  # im2col is a free reshape ((w, c) column order matches the prepped conv
  # weight); explicitly pad K 742 -> 768 for aligned MXU feeds.
  x3d = jnp.pad(x.reshape(B, L, W * C).astype(jnp.float32),
                ((0, 0), (0, 0), (0, K_PAD - W * C)))

  out12, attn = pl.pallas_call(
      functools.partial(_convformer_kernel,
                        n_heads=N_HEADS, d_head=D_MODEL // N_HEADS, au_len=L),
      out_shape=(
          jax.ShapeDtypeStruct((B, L, 2 * OUT_PAD), jnp.float32),
          jax.ShapeDtypeStruct((B, N_HEADS, L, L), jnp.float32),
      ),
      grid=(B,),
      in_specs=[
          pl.BlockSpec((None, L, K_PAD), lambda b: (b, 0, 0)),      # per-batch tokens
          pl.BlockSpec((K_PAD, 128), lambda b: (0, 0)),             # weights pinned
          pl.BlockSpec((128, 128), lambda b: (0, 0)),
          pl.BlockSpec((128, 128), lambda b: (0, 0)),
          pl.BlockSpec((16, 128), lambda b: (0, 0)),
      ],
      out_specs=(
          pl.BlockSpec((None, L, 2 * OUT_PAD), lambda b: (b, 0, 0)),
          pl.BlockSpec((None, N_HEADS, L, L), lambda b: (b, 0, 0, 0)),
      ),
      compiler_params=pltpu.CompilerParams(
          dimension_semantics=("parallel",)),
  )(x3d, prep["conv_w"], prep["w2"], prep["ws"], prep["fvec"])

  # branch 1: torch flattens features as (L, B) -> rows in l-major order
  output1 = out12[:, :, :C_OUT].transpose(1, 0, 2).reshape(L * B, C_OUT)
  # branch 2: (B, L, c_out)
  output2 = out12[:, :, OUT_PAD:OUT_PAD + C_OUT]
  # attention weights already in (B, H, L, L); encoder returns one layer
  return output1, output2, [attn], None


# --------------------------------------------------------------------------
if __name__ == "__main__":
  key = jax.random.PRNGKey(0)
  kx, kp = jax.random.split(key)

  B = 2
  x = jax.random.normal(kx, (B, AU_LEN, IMU_LEN, CHANNELS), dtype=jnp.float32)
  params = init_params(kp)
  prep = prepare_params(params)          # hoisted weight packing / padding

  fwd = jax.jit(convformer_forward)
  out1, out2, attns, _ = fwd(x, prep)
  jax.block_until_ready((out1, out2, attns))

  assert out1.shape == (AU_LEN * B, C_OUT)
  assert out2.shape == (B, AU_LEN, C_OUT)
  assert attns[0].shape == (B, N_HEADS, AU_LEN, AU_LEN)
  assert bool(jnp.all(jnp.isfinite(out1))) and bool(jnp.all(jnp.isfinite(out2)))
  assert bool(jnp.all(jnp.isfinite(attns[0])))
  print("KERNEL_OK")
</pallas_src>

<mosaic_0001>
module attributes {stable_mosaic.version = 11 : i64} {
  func.func @_convformer_kernel(%arg0: i32, %arg1: memref<1x7x768xf32, #tpu.memory_space<vmem>>, %arg2: memref<768x128xbf16, #tpu.memory_space<vmem>>, %arg3: memref<128x128xbf16, #tpu.memory_space<vmem>>, %arg4: memref<128x128xbf16, #tpu.memory_space<vmem>>, %arg5: memref<16x128xf32, #tpu.memory_space<vmem>>, %arg6: memref<1x7x128xf32, #tpu.memory_space<vmem>>, %arg7: memref<1x4x7x7xf32, #tpu.memory_space<vmem>>) attributes {dimension_semantics = [#tpu.dimension_semantics<parallel>], iteration_bounds = array<i64: 2>, scalar_prefetch = 0 : i64, scratch_operands = 0 : i64, tpu.core_type = #tpu.core_type<tc>, window_params = [{transform_indices = @transform_0, window_bounds = array<i64: 1, 7, 768>}, {pipeline_mode = #tpu.pipeline_mode<synchronous>, transform_indices = @transform_1, window_bounds = array<i64: 768, 128>}, {pipeline_mode = #tpu.pipeline_mode<synchronous>, transform_indices = @transform_2, window_bounds = array<i64: 128, 128>}, {pipeline_mode = #tpu.pipeline_mode<synchronous>, transform_indices = @transform_3, window_bounds = array<i64: 128, 128>}, {pipeline_mode = #tpu.pipeline_mode<synchronous>, transform_indices = @transform_4, window_bounds = array<i64: 16, 128>}, {transform_indices = @transform_5, window_bounds = array<i64: 1, 7, 128>}, {transform_indices = @transform_6, window_bounds = array<i64: 1, 4, 7, 7>}]} {
    %c0 = arith.constant 0 : index
    %c0_0 = arith.constant 0 : index
    %0 = vector.load %arg5[%c0, %c0_0] : memref<16x128xf32, #tpu.memory_space<vmem>>, vector<16x128xf32>
    %c0_1 = arith.constant 0 : index
    %c0_2 = arith.constant 0 : index
    %1 = vector.load %arg4[%c0_1, %c0_2] : memref<128x128xbf16, #tpu.memory_space<vmem>>, vector<128x128xbf16>
    %c0_3 = arith.constant 0 : index
    %c0_4 = arith.constant 0 : index
    %c0_5 = arith.constant 0 : index
    %2 = vector.load %arg1[%c0_3, %c0_4, %c0_5] : memref<1x7x768xf32, #tpu.memory_space<vmem>>, vector<1x7x768xf32>
    %3 = vector.shape_cast %2 : vector<1x7x768xf32> to vector<7x768xf32>
    %4 = arith.truncf %3 : vector<7x768xf32> to vector<7x768xbf16>
    %c0_6 = arith.constant 0 : index
    %c0_7 = arith.constant 0 : index
    %5 = vector.load %arg2[%c0_6, %c0_7] : memref<768x128xbf16, #tpu.memory_space<vmem>>, vector<768x128xbf16>
    %cst = arith.constant dense<0.000000e+00> : vector<7x128xf32>
    %6 = tpu.matmul %4, %5, %cst {dimension_numbers = #tpu.dot_dimension_numbers<[1], [0], [0], [1], [0, 0, 1, 1], [], []>} : vector<7x768xbf16>, vector<768x128xbf16>, vector<7x128xf32> -> vector<7x128xf32>
    %7 = vector.extract_strided_slice %0 {offsets = [0, 0], sizes = [1, 128], strides = [1, 1]} : vector<16x128xf32> to vector<1x128xf32>
    %8 = vector.broadcast %7 : vector<1x128xf32> to vector<7x128xf32>
    %9 = arith.addf %6, %8 : vector<7x128xf32>
    %cst_8 = arith.constant 0.000000e+00 : f32
    %10 = vector.broadcast %cst_8 : f32 to vector<7x128xf32>
    %11 = arith.cmpf oge, %9, %10 : vector<7x128xf32>
    %cst_9 = arith.constant 0.00999999977 : f32
    %12 = vector.broadcast %cst_9 : f32 to vector<7x128xf32>
    %13 = arith.mulf %12, %9 : vector<7x128xf32>
    %14 = arith.select %11, %9, %13 : vector<7x128xi1>, vector<7x128xf32>
    %15 = arith.truncf %14 : vector<7x128xf32> to vector<7x128xbf16>
    %c0_10 = arith.constant 0 : index
    %c0_11 = arith.constant 0 : index
    %16 = vector.load %arg3[%c0_10, %c0_11] : memref<128x128xbf16, #tpu.memory_space<vmem>>, vector<128x128xbf16>
    %cst_12 = arith.constant dense<0.000000e+00> : vector<7x128xf32>
    %17 = tpu.matmul %15, %16, %cst_12 {dimension_numbers = #tpu.dot_dimension_numbers<[1], [0], [0], [1], [0, 0, 1, 1], [], []>} : vector<7x128xbf16>, vector<128x128xbf16>, vector<7x128xf32> -> vector<7x128xf32>
    %18 = vector.extract_strided_slice %0 {offsets = [1, 0], sizes = [1, 128], strides = [1, 1]} : vector<16x128xf32> to vector<1x128xf32>
    %19 = vector.broadcast %18 : vector<1x128xf32> to vector<7x128xf32>
    %20 = arith.addf %17, %19 : vector<7x128xf32>
    %21 = vector.extract_strided_slice %20 {offsets = [0, 0], sizes = [7, 64], strides = [1, 1]} : vector<7x128xf32> to vector<7x64xf32>
    %cst_13 = arith.constant 0.000000e+00 : f32
    %22 = vector.broadcast %cst_13 : f32 to vector<7x64xf32>
    %23 = arith.cmpf oge, %21, %22 : vector<7x64xf32>
    %cst_14 = arith.constant 0.00999999977 : f32
    %24 = vector.broadcast %cst_14 : f32 to vector<7x64xf32>
    %25 = arith.mulf %24, %21 : vector<7x64xf32>
    %26 = arith.select %23, %21, %25 : vector<7x64xi1>, vector<7x64xf32>
    %27 = vector.extract_strided_slice %20 {offsets = [0, 64], sizes = [7, 32], strides = [1, 1]} : vector<7x128xf32> to vector<7x32xf32>
    %28 = vector.extract_strided_slice %0 {offsets = [8, 0], sizes = [7, 32], strides = [1, 1]} : vector<16x128xf32> to vector<7x32xf32>
    %29 = arith.addf %27, %28 : vector<7x32xf32>
    %30 = arith.truncf %29 : vector<7x32xf32> to vector<7x32xbf16>
    %31 = vector.extract_strided_slice %1 {offsets = [0, 0], sizes = [32, 128], strides = [1, 1]} : vector<128x128xbf16> to vector<32x128xbf16>
    %cst_15 = arith.constant dense<0.000000e+00> : vector<7x128xf32>
    %32 = tpu.matmul %30, %31, %cst_15 {dimension_numbers = #tpu.dot_dimension_numbers<[1], [0], [0], [1], [0, 0, 1, 1], [], []>} : vector<7x32xbf16>, vector<32x128xbf16>, vector<7x128xf32> -> vector<7x128xf32>
    %33 = vector.extract_strided_slice %32 {offsets = [0, 0], sizes = [7, 96], strides = [1, 1]} : vector<7x128xf32> to vector<7x96xf32>
    %34 = vector.extract_strided_slice %0 {offsets = [2, 0], sizes = [1, 96], strides = [1, 1]} : vector<16x128xf32> to vector<1x96xf32>
    %35 = vector.broadcast %34 : vector<1x96xf32> to vector<7x96xf32>
    %36 = arith.addf %33, %35 : vector<7x96xf32>
    %37 = vector.extract_strided_slice %36 {offsets = [0, 0], sizes = [7, 32], strides = [1, 1]} : vector<7x96xf32> to vector<7x32xf32>
    %38 = vector.extract_strided_slice %36 {offsets = [0, 32], sizes = [7, 32], strides = [1, 1]} : vector<7x96xf32> to vector<7x32xf32>
    %39 = vector.extract_strided_slice %36 {offsets = [0, 64], sizes = [7, 32], strides = [1, 1]} : vector<7x96xf32> to vector<7x32xf32>
    %40 = vector.extract_strided_slice %37 {offsets = [0, 0], sizes = [7, 8], strides = [1, 1]} : vector<7x32xf32> to vector<7x8xf32>
    %41 = vector.extract_strided_slice %37 {offsets = [0, 8], sizes = [7, 8], strides = [1, 1]} : vector<7x32xf32> to vector<7x8xf32>
    %42 = vector.extract_strided_slice %37 {offsets = [0, 16], sizes = [7, 8], strides = [1, 1]} : vector<7x32xf32> to vector<7x8xf32>
    %43 = vector.extract_strided_slice %37 {offsets = [0, 24], sizes = [7, 8], strides = [1, 1]} : vector<7x32xf32> to vector<7x8xf32>
    %44 = vector.shape_cast %40 : vector<7x8xf32> to vector<1x7x8xf32>
    %45 = vector.shape_cast %41 : vector<7x8xf32> to vector<1x7x8xf32>
    %46 = vector.shape_cast %42 : vector<7x8xf32> to vector<1x7x8xf32>
    %47 = vector.shape_cast %43 : vector<7x8xf32> to vector<1x7x8xf32>
    %48 = tpu.concatenate %44, %45, %46, %47 in 0 : vector<1x7x8xf32>, vector<1x7x8xf32>, vector<1x7x8xf32>, vector<1x7x8xf32> -> vector<4x7x8xf32>
    %49 = arith.truncf %48 : vector<4x7x8xf32> to vector<4x7x8xbf16>
    %50 = vector.extract_strided_slice %38 {offsets = [0, 0], sizes = [7, 8], strides = [1, 1]} : vector<7x32xf32> to vector<7x8xf32>
    %51 = vector.extract_strided_slice %38 {offsets = [0, 8], sizes = [7, 8], strides = [1, 1]} : vector<7x32xf32> to vector<7x8xf32>
    %52 = vector.extract_strided_slice %38 {offsets = [0, 16], sizes = [7, 8], strides = [1, 1]} : vector<7x32xf32> to vector<7x8xf32>
    %53 = vector.extract_strided_slice %38 {offsets = [0, 24], sizes = [7, 8], strides = [1, 1]} : vector<7x32xf32> to vector<7x8xf32>
    %54 = vector.shape_cast %50 : vector<7x8xf32> to vector<1x7x8xf32>
    %55 = vector.shape_cast %51 : vector<7x8xf32> to vector<1x7x8xf32>
    %56 = vector.shape_cast %52 : vector<7x8xf32> to vector<1x7x8xf32>
    %57 = vector.shape_cast %53 : vector<7x8xf32> to vector<1x7x8xf32>
    %58 = tpu.concatenate %54, %55, %56, %57 in 0 : vector<1x7x8xf32>, vector<1x7x8xf32>, vector<1x7x8xf32>, vector<1x7x8xf32> -> vector<4x7x8xf32>
    %59 = arith.truncf %58 : vector<4x7x8xf32> to vector<4x7x8xbf16>
    %60 = vector.extract_strided_slice %39 {offsets = [0, 0], sizes = [7, 8], strides = [1, 1]} : vector<7x32xf32> to vector<7x8xf32>
    %61 = vector.extract_strided_slice %39 {offsets = [0, 8], sizes = [7, 8], strides = [1, 1]} : vector<7x32xf32> to vector<7x8xf32>
    %62 = vector.extract_strided_slice %39 {offsets = [0, 16], sizes = [7, 8], strides = [1, 1]} : vector<7x32xf32> to vector<7x8xf32>
    %63 = vector.extract_strided_slice %39 {offsets = [0, 24], sizes = [7, 8], strides = [1, 1]} : vector<7x32xf32> to vector<7x8xf32>
    %64 = vector.shape_cast %60 : vector<7x8xf32> to vector<1x7x8xf32>
    %65 = vector.shape_cast %61 : vector<7x8xf32> to vector<1x7x8xf32>
    %66 = vector.shape_cast %62 : vector<7x8xf32> to vector<1x7x8xf32>
    %67 = vector.shape_cast %63 : vector<7x8xf32> to vector<1x7x8xf32>
    %68 = tpu.concatenate %64, %65, %66, %67 in 0 : vector<1x7x8xf32>, vector<1x7x8xf32>, vector<1x7x8xf32>, vector<1x7x8xf32> -> vector<4x7x8xf32>
    %69 = arith.truncf %68 : vector<4x7x8xf32> to vector<4x7x8xbf16>
    "tpu.trace_start"() <{level = 10 : i32, message = "hqd,hkd->hqk"}> : () -> ()
    %cst_16 = arith.constant dense<0.000000e+00> : vector<4x7x7xf32>
    %70 = tpu.matmul %49, %59, %cst_16 {dimension_numbers = #tpu.dot_dimension_numbers<[2], [2], [1], [1], [0, 0, 0, 1, 1, 1], [0], [0]>} : vector<4x7x8xbf16>, vector<4x7x8xbf16>, vector<4x7x7xf32> -> vector<4x7x7xf32>
    "tpu.trace_stop"() : () -> ()
    %cst_17 = arith.constant dense<0xFF800000> : vector<4x7xf32>
    %71 = vector.multi_reduction <maximumf>, %70, %cst_17 [2] : vector<4x7x7xf32> to vector<4x7xf32>
    %72 = vector.shape_cast %71 : vector<4x7xf32> to vector<4x7x1xf32>
    %73 = vector.broadcast %72 : vector<4x7x1xf32> to vector<4x7x7xf32>
    %74 = arith.subf %70, %73 : vector<4x7x7xf32>
    %75 = math.exp %74 : vector<4x7x7xf32>
    %cst_18 = arith.constant dense<0.000000e+00> : vector<4x7xf32>
    %76 = vector.multi_reduction <add>, %75, %cst_18 [2] : vector<4x7x7xf32> to vector<4x7xf32>
    %77 = vector.shape_cast %76 : vector<4x7xf32> to vector<4x7x1xf32>
    %78 = vector.broadcast %77 : vector<4x7x1xf32> to vector<4x7x7xf32>
    %79 = arith.divf %75, %78 : vector<4x7x7xf32>
    %c0_19 = arith.constant 0 : index
    %c0_20 = arith.constant 0 : index
    %c0_21 = arith.constant 0 : index
    %c0_22 = arith.constant 0 : index
    %80 = vector.load %arg7[%c0_19, %c0_20, %c0_21, %c0_22] : memref<1x4x7x7xf32, #tpu.memory_space<vmem>>, vector<1x4x7x7xf32>
    %81 = vector.shape_cast %80 : vector<1x4x7x7xf32> to vector<4x7x7xf32>
    %82 = vector.shape_cast %79 : vector<4x7x7xf32> to vector<1x4x7x7xf32>
    tpu.vector_store %arg7[%c0_19, %c0_20, %c0_21, %c0_22], %82 {strides = array<i32>} : memref<1x4x7x7xf32, #tpu.memory_space<vmem>>, vector<1x4x7x7xf32>,
    %83 = arith.truncf %79 : vector<4x7x7xf32> to vector<4x7x7xbf16>
    "tpu.trace_start"() <{level = 10 : i32, message = "hqk,hkd->hqd"}> : () -> ()
    %cst_23 = arith.constant dense<0.000000e+00> : vector<4x7x8xf32>
    %84 = tpu.matmul %83, %69, %cst_23 {dimension_numbers = #tpu.dot_dimension_numbers<[2], [1], [1], [2], [0, 0, 0, 1, 1, 2], [0], [0]>} : vector<4x7x7xbf16>, vector<4x7x8xbf16>, vector<4x7x8xf32> -> vector<4x7x8xf32>
    "tpu.trace_stop"() : () -> ()
    %85 = vector.extract_strided_slice %84 {offsets = [0, 0, 0], sizes = [1, 7, 8], strides = [1, 1, 1]} : vector<4x7x8xf32> to vector<1x7x8xf32>
    %86 = vector.shape_cast %85 : vector<1x7x8xf32> to vector<7x8xf32>
    %87 = vector.extract_strided_slice %84 {offsets = [1, 0, 0], sizes = [1, 7, 8], strides = [1, 1, 1]} : vector<4x7x8xf32> to vector<1x7x8xf32>
    %88 = vector.shape_cast %87 : vector<1x7x8xf32> to vector<7x8xf32>
    %89 = vector.extract_strided_slice %84 {offsets = [2, 0, 0], sizes = [1, 7, 8], strides = [1, 1, 1]} : vector<4x7x8xf32> to vector<1x7x8xf32>
    %90 = vector.shape_cast %89 : vector<1x7x8xf32> to vector<7x8xf32>
    %91 = vector.extract_strided_slice %84 {offsets = [3, 0, 0], sizes = [1, 7, 8], strides = [1, 1, 1]} : vector<4x7x8xf32> to vector<1x7x8xf32>
    %92 = vector.shape_cast %91 : vector<1x7x8xf32> to vector<7x8xf32>
    %93 = tpu.concatenate %86, %88, %90, %92 in 1 : vector<7x8xf32>, vector<7x8xf32>, vector<7x8xf32>, vector<7x8xf32> -> vector<7x32xf32>
    %94 = arith.truncf %93 : vector<7x32xf32> to vector<7x32xbf16>
    %95 = vector.extract_strided_slice %1 {offsets = [0, 96], sizes = [32, 32], strides = [1, 1]} : vector<128x128xbf16> to vector<32x32xbf16>
    %cst_24 = arith.constant dense<0.000000e+00> : vector<7x32xf32>
    %96 = tpu.matmul %94, %95, %cst_24 {dimension_numbers = #tpu.dot_dimension_numbers<[1], [0], [0], [1], [0, 0, 1, 1], [], []>} : vector<7x32xbf16>, vector<32x32xbf16>, vector<7x32xf32> -> vector<7x32xf32>
    %97 = vector.extract_strided_slice %0 {offsets = [2, 96], sizes = [1, 32], strides = [1, 1]} : vector<16x128xf32> to vector<1x32xf32>
    %98 = vector.broadcast %97 : vector<1x32xf32> to vector<7x32xf32>
    %99 = arith.addf %96, %98 : vector<7x32xf32>
    %100 = arith.addf %99, %29 : vector<7x32xf32>
    %101 = vector.extract_strided_slice %0 {offsets = [3, 0], sizes = [1, 32], strides = [1, 1]} : vector<16x128xf32> to vector<1x32xf32>
    %102 = vector.extract_strided_slice %0 {offsets = [3, 32], sizes = [1, 32], strides = [1, 1]} : vector<16x128xf32> to vector<1x32xf32>
    %cst_25 = arith.constant dense<0.000000e+00> : vector<7xf32>
    %103 = vector.multi_reduction <add>, %100, %cst_25 [1] : vector<7x32xf32> to vector<7xf32>
    %104 = vector.shape_cast %103 : vector<7xf32> to vector<7x1xf32>
    %cst_26 = arith.constant 3.200000e+01 : f32
    %105 = vector.broadcast %cst_26 : f32 to vector<7x1xf32>
    %106 = arith.divf %104, %105 : vector<7x1xf32>
    %107 = vector.broadcast %106 : vector<7x1xf32> to vector<7x32xf32>
    %108 = arith.subf %100, %107 : vector<7x32xf32>
    %109 = arith.mulf %108, %108 : vector<7x32xf32>
    %cst_27 = arith.constant dense<0.000000e+00> : vector<7xf32>
    %110 = vector.multi_reduction <add>, %109, %cst_27 [1] : vector<7x32xf32> to vector<7xf32>
    %111 = vector.shape_cast %110 : vector<7xf32> to vector<7x1xf32>
    %cst_28 = arith.constant 3.200000e+01 : f32
    %112 = vector.broadcast %cst_28 : f32 to vector<7x1xf32>
    %113 = arith.divf %111, %112 : vector<7x1xf32>
    %114 = vector.broadcast %106 : vector<7x1xf32> to vector<7x32xf32>
    %115 = arith.subf %100, %114 : vector<7x32xf32>
    %cst_29 = arith.constant 9.99999974E-6 : f32
    %116 = vector.broadcast %cst_29 : f32 to vector<7x1xf32>
    %117 = arith.addf %113, %116 : vector<7x1xf32>
    %118 = math.rsqrt %117 : vector<7x1xf32>
    %119 = vector.broadcast %118 : vector<7x1xf32> to vector<7x32xf32>
    %120 = arith.mulf %115, %119 : vector<7x32xf32>
    %121 = vector.broadcast %101 : vector<1x32xf32> to vector<7x32xf32>
    %122 = arith.mulf %120, %121 : vector<7x32xf32>
    %123 = vector.broadcast %102 : vector<1x32xf32> to vector<7x32xf32>
    %124 = arith.addf %122, %123 : vector<7x32xf32>
    %125 = arith.truncf %124 : vector<7x32xf32> to vector<7x32xbf16>
    %126 = vector.extract_strided_slice %1 {offsets = [32, 0], sizes = [32, 64], strides = [1, 1]} : vector<128x128xbf16> to vector<32x64xbf16>
    %cst_30 = arith.constant dense<0.000000e+00> : vector<7x64xf32>
    %127 = tpu.matmul %125, %126, %cst_30 {dimension_numbers = #tpu.dot_dimension_numbers<[1], [0], [0], [1], [0, 0, 1, 1], [], []>} : vector<7x32xbf16>, vector<32x64xbf16>, vector<7x64xf32> -> vector<7x64xf32>
    %128 = vector.extract_strided_slice %0 {offsets = [4, 0], sizes = [1, 64], strides = [1, 1]} : vector<16x128xf32> to vector<1x64xf32>
    %129 = vector.broadcast %128 : vector<1x64xf32> to vector<7x64xf32>
    %130 = arith.addf %127, %129 : vector<7x64xf32>
    %cst_31 = arith.constant 0.000000e+00 : f32
    %131 = vector.broadcast %cst_31 : f32 to vector<7x64xf32>
    %132 = arith.maximumf %130, %131 : vector<7x64xf32>
    %133 = arith.truncf %132 : vector<7x64xf32> to vector<7x64xbf16>
    %134 = vector.extract_strided_slice %1 {offsets = [64, 0], sizes = [64, 32], strides = [1, 1]} : vector<128x128xbf16> to vector<64x32xbf16>
    %cst_32 = arith.constant dense<0.000000e+00> : vector<7x32xf32>
    %135 = tpu.matmul %133, %134, %cst_32 {dimension_numbers = #tpu.dot_dimension_numbers<[1], [0], [0], [1], [0, 0, 1, 1], [], []>} : vector<7x64xbf16>, vector<64x32xbf16>, vector<7x32xf32> -> vector<7x32xf32>
    %136 = vector.extract_strided_slice %0 {offsets = [5, 0], sizes = [1, 32], strides = [1, 1]} : vector<16x128xf32> to vector<1x32xf32>
    %137 = vector.broadcast %136 : vector<1x32xf32> to vector<7x32xf32>
    %138 = arith.addf %135, %137 : vector<7x32xf32>
    %139 = arith.addf %138, %124 : vector<7x32xf32>
    %140 = vector.extract_strided_slice %0 {offsets = [3, 64], sizes = [1, 32], strides = [1, 1]} : vector<16x128xf32> to vector<1x32xf32>
    %141 = vector.extract_strided_slice %0 {offsets = [3, 96], sizes = [1, 32], strides = [1, 1]} : vector<16x128xf32> to vector<1x32xf32>
    %cst_33 = arith.constant dense<0.000000e+00> : vector<7xf32>
    %142 = vector.multi_reduction <add>, %139, %cst_33 [1] : vector<7x32xf32> to vector<7xf32>
    %143 = vector.shape_cast %142 : vector<7xf32> to vector<7x1xf32>
    %cst_34 = arith.constant 3.200000e+01 : f32
    %144 = vector.broadcast %cst_34 : f32 to vector<7x1xf32>
    %145 = arith.divf %143, %144 : vector<7x1xf32>
    %146 = vector.broadcast %145 : vector<7x1xf32> to vector<7x32xf32>
    %147 = arith.subf %139, %146 : vector<7x32xf32>
    %148 = arith.mulf %147, %147 : vector<7x32xf32>
    %cst_35 = arith.constant dense<0.000000e+00> : vector<7xf32>
    %149 = vector.multi_reduction <add>, %148, %cst_35 [1] : vector<7x32xf32> to vector<7xf32>
    %150 = vector.shape_cast %149 : vector<7xf32> to vector<7x1xf32>
    %cst_36 = arith.constant 3.200000e+01 : f32
    %151 = vector.broadcast %cst_36 : f32 to vector<7x1xf32>
    %152 = arith.divf %150, %151 : vector<7x1xf32>
    %153 = vector.broadcast %145 : vector<7x1xf32> to vector<7x32xf32>
    %154 = arith.subf %139, %153 : vector<7x32xf32>
    %cst_37 = arith.constant 9.99999974E-6 : f32
    %155 = vector.broadcast %cst_37 : f32 to vector<7x1xf32>
    %156 = arith.addf %152, %155 : vector<7x1xf32>
    %157 = math.rsqrt %156 : vector<7x1xf32>
    %158 = vector.broadcast %157 : vector<7x1xf32> to vector<7x32xf32>
    %159 = arith.mulf %154, %158 : vector<7x32xf32>
    %160 = vector.broadcast %140 : vector<1x32xf32> to vector<7x32xf32>
    %161 = arith.mulf %159, %160 : vector<7x32xf32>
    %162 = vector.broadcast %141 : vector<1x32xf32> to vector<7x32xf32>
    %163 = arith.addf %161, %162 : vector<7x32xf32>
    %164 = arith.truncf %163 : vector<7x32xf32> to vector<7x32xbf16>
    %165 = vector.extract_strided_slice %1 {offsets = [32, 64], sizes = [32, 64], strides = [1, 1]} : vector<128x128xbf16> to vector<32x64xbf16>
    %cst_38 = arith.constant dense<0.000000e+00> : vector<7x64xf32>
    %166 = tpu.matmul %164, %165, %cst_38 {dimension_numbers = #tpu.dot_dimension_numbers<[1], [0], [0], [1], [0, 0, 1, 1], [], []>} : vector<7x32xbf16>, vector<32x64xbf16>, vector<7x64xf32> -> vector<7x64xf32>
    %167 = vector.extract_strided_slice %0 {offsets = [4, 64], sizes = [1, 64], strides = [1, 1]} : vector<16x128xf32> to vector<1x64xf32>
    %168 = vector.broadcast %167 : vector<1x64xf32> to vector<7x64xf32>
    %169 = arith.addf %166, %168 : vector<7x64xf32>
    %170 = tpu.concatenate %26, %169 in 1 : vector<7x64xf32>, vector<7x64xf32> -> vector<7x128xf32>
    %c0_39 = arith.constant 0 : index
    %c0_40 = arith.constant 0 : index
    %c0_41 = arith.constant 0 : index
    %171 = vector.load %arg6[%c0_39, %c0_40, %c0_41] : memref<1x7x128xf32, #tpu.memory_space<vmem>>, vector<1x7x128xf32>
    %172 = vector.shape_cast %171 : vector<1x7x128xf32> to vector<7x128xf32>
    %173 = vector.shape_cast %170 : vector<7x128xf32> to vector<1x7x128xf32>
    tpu.vector_store %arg6[%c0_39, %c0_40, %c0_41], %173 {strides = array<i32>} : memref<1x7x128xf32, #tpu.memory_space<vmem>>, vector<1x7x128xf32>,
    return
  }
  func.func @transform_0(%arg0: i32) -> (i32, i32, i32) {
    %c0_i32 = arith.constant 0 : i32
    %c0_i32_0 = arith.constant 0 : i32
    %c0_i32_1 = arith.constant 0 : i32
    return %arg0, %c0_i32, %c0_i32_0 : i32, i32, i32
  }
  func.func @transform_1(%arg0: i32) -> (i32, i32) {
    %c0_i32 = arith.constant 0 : i32
    %c0_i32_0 = arith.constant 0 : i32
    %c0_i32_1 = arith.constant 0 : i32
    return %c0_i32, %c0_i32_0 : i32, i32
  }
  func.func @transform_2(%arg0: i32) -> (i32, i32) {
    %c0_i32 = arith.constant 0 : i32
    %c0_i32_0 = arith.constant 0 : i32
    %c0_i32_1 = arith.constant 0 : i32
    return %c0_i32, %c0_i32_0 : i32, i32
  }
  func.func @transform_3(%arg0: i32) -> (i32, i32) {
    %c0_i32 = arith.constant 0 : i32
    %c0_i32_0 = arith.constant 0 : i32
    %c0_i32_1 = arith.constant 0 : i32
    return %c0_i32, %c0_i32_0 : i32, i32
  }
  func.func @transform_4(%arg0: i32) -> (i32, i32) {
    %c0_i32 = arith.constant 0 : i32
    %c0_i32_0 = arith.constant 0 : i32
    %c0_i32_1 = arith.constant 0 : i32
    return %c0_i32, %c0_i32_0 : i32, i32
  }
  func.func @transform_5(%arg0: i32) -> (i32, i32, i32) {
    %c0_i32 = arith.constant 0 : i32
    %c0_i32_0 = arith.constant 0 : i32
    %c0_i32_1 = arith.constant 0 : i32
    return %arg0, %c0_i32, %c0_i32_0 : i32, i32, i32
  }
  func.func @transform_6(%arg0: i32) -> (i32, i32, i32, i32) {
    %c0_i32 = arith.constant 0 : i32
    %c0_i32_0 = arith.constant 0 : i32
    %c0_i32_1 = arith.constant 0 : i32
    %c0_i32_2 = arith.constant 0 : i32
    return %arg0, %c0_i32, %c0_i32_0, %c0_i32_1 : i32, i32, i32, i32
  }
}

</mosaic_0001>

<llo_original>
// kernel: convformer_forward.1
$region0: #{convformer_forward.1}
  #allocation0 [shape = 'u32[]', space=smem, size = 0x4, offset = 0x4, fixed_abs, tag = 'smem constant byte address 0x4 - core index']
  #allocation1 [shape = 'u32[144,128]{1,0:T(1,128)}', space=vmem, size = 0x12000, scoped, tag = 'internal scratch']
  %s0 = inlined_call_operand.vmem [shape: f32[2,7,768], index: 0, kind: input, shape index: {}]
  %s1 = inlined_call_operand.vmem [shape: bf16[768,128], index: 1, kind: input, shape index: {}]
  %s2 = inlined_call_operand.vmem [shape: bf16[128,128], index: 2, kind: input, shape index: {}]
  %s3 = inlined_call_operand.vmem [shape: bf16[128,128], index: 3, kind: input, shape index: {}]
  %s4 = inlined_call_operand.vmem [shape: f32[16,128], index: 4, kind: input, shape index: {}]
  %s5 = inlined_call_operand.vmem [shape: f32[2,7,128], index: 5, kind: output, shape index: {0}]
  %s6 = inlined_call_operand.vmem [shape: f32[2,4,7,7], index: 6, kind: output, shape index: {1}]
  %7 = xla_tuple %s5, %s6
  %s8 = sld [smem:[#allocation0]]
  $region61: #{convformer_forward.1} parent=0
    _
  %s10 = ssub.s32 1, %s8
  %s11 = scalar_select 0, %s10, %s8
  loop: start=0, step=1, limit=4
  $region2: #{convformer_forward.1} parent=0 // loop_pre_header
    _
  $region3: #{convformer_forward.1} parent=0 // loop_header
    %s13 = sphi 0, %s17
    %p14 = scmp.ge.s32.totalorder %s13, 4
    %s23 = sphi 0, %s25
    %s26 = sphi 0, %s23
    %s27 = sphi 0, %s26
    %s43 = sphi 0, %s27
    %s47 = sphi 0, %s47
    %s49 = sphi 0, %s47
    %s50 = sphi 0, %s49
    %s64 = sphi 0, %s50
    %s68 = sphi 0, %s68
    %s70 = sphi 0, %s68
    %s71 = sphi 0, %s70
    %s85 = sphi 0, %s71
    %s89 = sphi 0, %s89
    %s91 = sphi 0, %s89
    %s92 = sphi 0, %s91
    %s106 = sphi 0, %s92
    %s110 = sphi 0, %s110
    %s112 = sphi 0, %s110
    %s113 = sphi 0, %s112
    %s127 = sphi 0, %s113
    %s133 = sphi 0, %s135
    %s136 = sphi 0, %s133
    %s137 = sphi 0, %s136
    %s153 = sphi 0, %s137
    %s159 = sphi 0, %s161
    %s162 = sphi 0, %s159
    %s163 = sphi 0, %s162
    %s179 = sphi 0, %s163
  $region4: #{convformer_forward.1} parent=0 // loop_header_branch
    %16 = sbr.rel (%p14) target = $region8
  $region5: #{convformer_forward.1} parent=0 // loop_body
    %s18 = ssub.s32 %s13, 1
    %s19 = ssub.s32 %s13, 2
    %s20 = sadd.s32 %s13, 1
    %s21 = ssub.s32 %s13, %s20
    %p22 = scmp.eq.s32.totalorder %s21, 0
    %s24 = sadd.s32 %s23, 1
    %s25 = scalar_select %p22, %s23, %s24
    %p28 = pneg %p22
    %p29 = scmp.eq.s32.totalorder %s13, 1
    %p30 = por %p28, %p29
    %p31 = scmp.ne.s32.totalorder %s23, %s26
    %p32 = scmp.eq.s32.totalorder %s13, 0
    %p33 = por %p31, %p32
    %p34 = scmp.ne.s32.totalorder %s23, %s26
    %p35 = scmp.eq.s32.totalorder %s18, 1
    %p36 = por %p34, %p35
    %p37 = scmp.ne.s32.totalorder %s26, %s27
    %p38 = scmp.eq.s32.totalorder %s18, 0
    %p39 = por %p37, %p38
    %p40 = scmp.ne.s32.totalorder %s26, %s27
    %p41 = scmp.eq.s32.totalorder %s19, 1
    %p42 = por %p40, %p41
    %p44 = scmp.ne.s32.totalorder %s27, %s43
    %p45 = scmp.eq.s32.totalorder %s19, 0
    %p46 = por %p44, %p45
    %s48 = sadd.s32 %s47, 1
    %p51 = scmp.eq.s32.totalorder %s13, 1
    %p52 = scmp.ne.s32.totalorder %s47, %s49
    %p53 = scmp.eq.s32.totalorder %s13, 0
    %p54 = por %p52, %p53
    %p55 = scmp.ne.s32.totalorder %s47, %s49
    %p56 = scmp.eq.s32.totalorder %s18, 1
    %p57 = por %p55, %p56
    %p58 = scmp.ne.s32.totalorder %s49, %s50
    %p59 = scmp.eq.s32.totalorder %s18, 0
    %p60 = por %p58, %p59
    %p61 = scmp.ne.s32.totalorder %s49, %s50
    %p62 = scmp.eq.s32.totalorder %s19, 1
    %p63 = por %p61, %p62
    %p65 = scmp.ne.s32.totalorder %s50, %s64
    %p66 = scmp.eq.s32.totalorder %s19, 0
    %p67 = por %p65, %p66
    %s69 = sadd.s32 %s68, 1
    %p72 = scmp.eq.s32.totalorder %s13, 1
    %p73 = scmp.ne.s32.totalorder %s68, %s70
    %p74 = scmp.eq.s32.totalorder %s13, 0
    %p75 = por %p73, %p74
    %p76 = scmp.ne.s32.totalorder %s68, %s70
    %p77 = scmp.eq.s32.totalorder %s18, 1
    %p78 = por %p76, %p77
    %p79 = scmp.ne.s32.totalorder %s70, %s71
    %p80 = scmp.eq.s32.totalorder %s18, 0
    %p81 = por %p79, %p80
    %p82 = scmp.ne.s32.totalorder %s70, %s71
    %p83 = scmp.eq.s32.totalorder %s19, 1
    %p84 = por %p82, %p83
    %p86 = scmp.ne.s32.totalorder %s71, %s85
    %p87 = scmp.eq.s32.totalorder %s19, 0
    %p88 = por %p86, %p87
    %s90 = sadd.s32 %s89, 1
    %p93 = scmp.eq.s32.totalorder %s13, 1
    %p94 = scmp.ne.s32.totalorder %s89, %s91
    %p95 = scmp.eq.s32.totalorder %s13, 0
    %p96 = por %p94, %p95
    %p97 = scmp.ne.s32.totalorder %s89, %s91
    %p98 = scmp.eq.s32.totalorder %s18, 1
    %p99 = por %p97, %p98
    %p100 = scmp.ne.s32.totalorder %s91, %s92
    %p101 = scmp.eq.s32.totalorder %s18, 0
    %p102 = por %p100, %p101
    %p103 = scmp.ne.s32.totalorder %s91, %s92
    %p104 = scmp.eq.s32.totalorder %s19, 1
    %p105 = por %p103, %p104
    %p107 = scmp.ne.s32.totalorder %s92, %s106
    %p108 = scmp.eq.s32.totalorder %s19, 0
    %p109 = por %p107, %p108
    %s111 = sadd.s32 %s110, 1
    %p114 = scmp.eq.s32.totalorder %s13, 1
    %p115 = scmp.ne.s32.totalorder %s110, %s112
    %p116 = scmp.eq.s32.totalorder %s13, 0
    %p117 = por %p115, %p116
    %p118 = scmp.ne.s32.totalorder %s110, %s112
    %p119 = scmp.eq.s32.totalorder %s18, 1
    %p120 = por %p118, %p119
    %p121 = scmp.ne.s32.totalorder %s112, %s113
    %p122 = scmp.eq.s32.totalorder %s18, 0
    %p123 = por %p121, %p122
    %p124 = scmp.ne.s32.totalorder %s112, %s113
    %p125 = scmp.eq.s32.totalorder %s19, 1
    %p126 = por %p124, %p125
    %p128 = scmp.ne.s32.totalorder %s113, %s127
    %p129 = scmp.eq.s32.totalorder %s19, 0
    %p130 = por %p128, %p129
    %s131 = ssub.s32 %s13, %s20
    %p132 = scmp.eq.s32.totalorder %s131, 0
    %s134 = sadd.s32 %s133, 1
    %s135 = scalar_select %p132, %s133, %s134
    %p138 = pneg %p132
    %p139 = scmp.eq.s32.totalorder %s13, 1
    %p140 = por %p138, %p139
    %p141 = scmp.ne.s32.totalorder %s133, %s136
    %p142 = scmp.eq.s32.totalorder %s13, 0
    %p143 = por %p141, %p142
    %p144 = scmp.ne.s32.totalorder %s133, %s136
    %p145 = scmp.eq.s32.totalorder %s18, 1
    %p146 = por %p144, %p145
    %p147 = scmp.ne.s32.totalorder %s136, %s137
    %p148 = scmp.eq.s32.totalorder %s18, 0
    %p149 = por %p147, %p148
    %p150 = scmp.ne.s32.totalorder %s136, %s137
    %p151 = scmp.eq.s32.totalorder %s19, 1
    %p152 = por %p150, %p151
    %p154 = scmp.ne.s32.totalorder %s137, %s153
    %p155 = scmp.eq.s32.totalorder %s19, 0
    %p156 = por %p154, %p155
    %s157 = ssub.s32 %s13, %s20
    %p158 = scmp.eq.s32.totalorder %s157, 0
    %s160 = sadd.s32 %s159, 1
    %s161 = scalar_select %p158, %s159, %s160
    %p164 = pneg %p158
    %p165 = scmp.eq.s32.totalorder %s13, 1
    %p166 = por %p164, %p165
    %p167 = scmp.ne.s32.totalorder %s159, %s162
    %p168 = scmp.eq.s32.totalorder %s13, 0
    %p169 = por %p167, %p168
    %p170 = scmp.ne.s32.totalorder %s159, %s162
    %p171 = scmp.eq.s32.totalorder %s18, 1
    %p172 = por %p170, %p171
    %p173 = scmp.ne.s32.totalorder %s162, %s163
    %p174 = scmp.eq.s32.totalorder %s18, 0
    %p175 = por %p173, %p174
    %p176 = scmp.ne.s32.totalorder %s162, %s163
    %p177 = scmp.eq.s32.totalorder %s19, 1
    %p178 = por %p176, %p177
    %p180 = scmp.ne.s32.totalorder %s163, %s179
    %p181 = scmp.eq.s32.totalorder %s19, 0
    %p182 = por %p180, %p181
    %p183 = scmp.le.s32.totalorder 1, %s13
    %p184 = scmp.lt.s32.totalorder %s13, 3
    %p185 = pnand %p183, %p184
    %p186 = pneg %p185
    // Predicated region
    $region9: #{convformer_forward.1} parent=5 // pred_check
      _
    $region10: #{convformer_forward.1} parent=5 // pred_check_branch
      %188 = sbr.rel (%p185) target = $region12
    $region11: #{convformer_forward.1} parent=5 // pred_region
      %s189 = ssub.s32 %s13, 1
      // Predicated region
      $region13: #{convformer_forward.1} parent=11 // pred_check
        %p190 = pneg %p60
      $region14: #{convformer_forward.1} parent=11 // pred_check_branch
        %192 = sbr.rel (%p190) target = $region16
      $region15: #{convformer_forward.1} parent=11 // pred_region
        _
      $region16: #{convformer_forward.1} parent=11 // pred_fallthru
        _
      // Predicated region
      $region17: #{convformer_forward.1} parent=11 // pred_check
        %p193 = pneg %p81
      $region18: #{convformer_forward.1} parent=11 // pred_check_branch
        %195 = sbr.rel (%p193) target = $region20
      $region19: #{convformer_forward.1} parent=11 // pred_region
        _
      $region20: #{convformer_forward.1} parent=11 // pred_fallthru
        _
      // Predicated region
      $region21: #{convformer_forward.1} parent=11 // pred_check
        %p196 = pneg %p102
      $region22: #{convformer_forward.1} parent=11 // pred_check_branch
        %198 = sbr.rel (%p196) target = $region24
      $region23: #{convformer_forward.1} parent=11 // pred_region
        _
      $region24: #{convformer_forward.1} parent=11 // pred_fallthru
        _
      // Predicated region
      $region25: #{convformer_forward.1} parent=11 // pred_check
        %p199 = pneg %p123
      $region26: #{convformer_forward.1} parent=11 // pred_check_branch
        %201 = sbr.rel (%p199) target = $region28
      $region27: #{convformer_forward.1} parent=11 // pred_region
        _
      $region28: #{convformer_forward.1} parent=11 // pred_fallthru
        _
    $region12: #{convformer_forward.1} parent=5 // pred_fallthru
      _
    %p202 = scmp.lt.s32.totalorder %s13, 2
    // Predicated region
    $region29: #{convformer_forward.1} parent=5 // pred_check
      %p203 = pneg %p202
    $region30: #{convformer_forward.1} parent=5 // pred_check_branch
      %205 = sbr.rel (%p203) target = $region32
    $region31: #{convformer_forward.1} parent=5 // pred_region
      // Predicated region
      $region33: #{convformer_forward.1} parent=31 // pred_check
        %p206 = pneg %p33
      $region34: #{convformer_forward.1} parent=31 // pred_check_branch
        %208 = sbr.rel (%p206) target = $region36
      $region35: #{convformer_forward.1} parent=31 // pred_region
        %p209 = scmp.lt.s32.totalorder %s13, 1
        %s210 = scalar_select %p209, %s13, 1
        %s211 = smul.addr %s210, 6
        %s212 = smul.addr %s211, 8
        %s213 = scalar_lea.vmem %s0, %s212
      $region36: #{convformer_forward.1} parent=31 // pred_fallthru
        _
    $region32: #{convformer_forward.1} parent=5 // pred_fallthru
      _
    %p214 = scmp.le.s32.totalorder 1, %s13
    %p215 = scmp.lt.s32.totalorder %s13, 3
    %p216 = pnand %p214, %p215
    %p217 = pneg %p216
    // Predicated region
    $region37: #{convformer_forward.1} parent=5 // pred_check
      _
    $region38: #{convformer_forward.1} parent=5 // pred_check_branch
      %219 = sbr.rel (%p216) target = $region40
    $region39: #{convformer_forward.1} parent=5 // pred_region
      %s220 = ssub.s32 %s13, 1
      %p221 = scmp.lt.s32.totalorder %s18, 1
      %s222 = scalar_select %p221, %s18, 1
      %s223 = smul.addr %s222, 6
      %s224 = smul.addr %s223, 8
      %s225 = scalar_lea.vmem %s0, %s224
      %p226 = pneg %p39
      %p227 = pneg %p36
      %p228 = pneg %p60
      %p229 = pneg %p57
      %p230 = pneg %p81
      %p231 = pneg %p78
      %p232 = pneg %p102
      %p233 = pneg %p99
      %p234 = pneg %p123
      %p235 = pneg %p120
      %p236 = pneg %p149
      %p237 = pneg %p146
      %p238 = scmp.lt.s32.totalorder %s18, 1
      %s239 = scalar_select %p238, %s18, 1
      %s240 = smul.addr %s239, 8
      %s241 = scalar_lea.vmem %s5, %s240
      %p242 = pneg %p175
      %p243 = pneg %p172
      %p244 = scmp.lt.s32.totalorder %s18, 1
      %s245 = scalar_select %p244, %s18, 1
      %s246 = smul.addr %s245, 4
      %s247 = smul.addr %s246, 8
      %s248 = scalar_lea.vmem %s6, %s247
      %p249 = scmp.lt.s32.totalorder %s18, 1
      %s250 = scalar_select %p249, %s18, 1
      %s251 = smul.addr %s250, 6
      %s252 = smul.addr %s251, 8
      %s253 = scalar_lea.vmem %s0, %s252
      %p254 = scmp.lt.s32.totalorder %s18, 1
      %s255 = scalar_select %p254, %s18, 1
      %s256 = smul.addr %s255, 8
      %s257 = scalar_lea.vmem %s5, %s256
      %p258 = scmp.lt.s32.totalorder %s18, 1
      %s259 = scalar_select %p258, %s18, 1
      %s260 = smul.addr %s259, 4
      %s261 = smul.addr %s260, 8
      %s262 = scalar_lea.vmem %s6, %s261
      %v264 = vld [vmem:[%s4] sm:$0xff]
      %v265 = vld [vmem:[%s4 + $0x8] sm:$0xff]
      %v266 = vld [vmem:[%s3] sm:$0xf]
      %v267 = vld [vmem:[%s3 + $0x4] sm:$0xf]
      %v268 = vld [vmem:[%s3 + $0x8] sm:$0xf]
      %v269 = vld [vmem:[%s3 + $0xc] sm:$0xf]
      %v270 = vld [vmem:[%s3 + $0x10] sm:$0xf]
      %v271 = vld [vmem:[%s3 + $0x14] sm:$0xf]
      %v272 = vld [vmem:[%s3 + $0x18] sm:$0xf]
      %v273 = vld [vmem:[%s3 + $0x1c] sm:$0xf]
      %v274 = vld [vmem:[%s3 + $0x20] sm:$0xf]
      %v275 = vld [vmem:[%s3 + $0x24] sm:$0xf]
      %v276 = vld [vmem:[%s3 + $0x28] sm:$0xf]
      %v277 = vld [vmem:[%s3 + $0x2c] sm:$0xf]
      %v278 = vld [vmem:[%s3 + $0x30] sm:$0xf]
      %v279 = vld [vmem:[%s3 + $0x34] sm:$0xf]
      %v280 = vld [vmem:[%s3 + $0x38] sm:$0xf]
      %v281 = vld [vmem:[%s3 + $0x3c] sm:$0xf]
      %v282 = vld [vmem:[%s253] sm:$0x7f]
      %v283 = vld [vmem:[%s253 + $0x8] sm:$0x7f]
      %v284 = vld [vmem:[%s253 + $0x10] sm:$0x7f]
      %v285 = vld [vmem:[%s253 + $0x18] sm:$0x7f]
      %v286 = vld [vmem:[%s253 + $0x20] sm:$0x7f]
      %v287 = vld [vmem:[%s253 + $0x28] sm:$0x7f]
      %v288 = vpack.c.bf16 %v282, %v282
      %v289 = vpack.c.bf16 %v283, %v283
      %v290 = vpack.c.bf16 %v284, %v284
      %v291 = vpack.c.bf16 %v285, %v285
      %v292 = vpack.c.bf16 %v286, %v286
      %v293 = vpack.c.bf16 %v287, %v287
      %v294 = vld [vmem:[%s1] sm:$0xf]
      %v295 = vld [vmem:[%s1 + $0x4] sm:$0xf]
      %v296 = vld [vmem:[%s1 + $0x8] sm:$0xf]
      %v297 = vld [vmem:[%s1 + $0xc] sm:$0xf]
      %v298 = vld [vmem:[%s1 + $0x10] sm:$0xf]
      %v299 = vld [vmem:[%s1 + $0x14] sm:$0xf]
      %v300 = vld [vmem:[%s1 + $0x18] sm:$0xf]
      %v301 = vld [vmem:[%s1 + $0x1c] sm:$0xf]
      %v302 = vld [vmem:[%s1 + $0x20] sm:$0xf]
      %v303 = vld [vmem:[%s1 + $0x24] sm:$0xf]
      %v304 = vld [vmem:[%s1 + $0x28] sm:$0xf]
      %v305 = vld [vmem:[%s1 + $0x2c] sm:$0xf]
      %v306 = vld [vmem:[%s1 + $0x30] sm:$0xf]
      %v307 = vld [vmem:[%s1 + $0x34] sm:$0xf]
      %v308 = vld [vmem:[%s1 + $0x38] sm:$0xf]
      %v309 = vld [vmem:[%s1 + $0x3c] sm:$0xf]
      %v310 = vld [vmem:[%s1 + $0x40] sm:$0xf]
      %v311 = vld [vmem:[%s1 + $0x44] sm:$0xf]
      %v312 = vld [vmem:[%s1 + $0x48] sm:$0xf]
      %v313 = vld [vmem:[%s1 + $0x4c] sm:$0xf]
      %v314 = vld [vmem:[%s1 + $0x50] sm:$0xf]
      %v315 = vld [vmem:[%s1 + $0x54] sm:$0xf]
      %v316 = vld [vmem:[%s1 + $0x58] sm:$0xf]
      %v317 = vld [vmem:[%s1 + $0x5c] sm:$0xf]
      %v318 = vld [vmem:[%s1 + $0x60] sm:$0xf]
      %v319 = vld [vmem:[%s1 + $0x64] sm:$0xf]
      %v320 = vld [vmem:[%s1 + $0x68] sm:$0xf]
      %v321 = vld [vmem:[%s1 + $0x6c] sm:$0xf]
      %v322 = vld [vmem:[%s1 + $0x70] sm:$0xf]
      %v323 = vld [vmem:[%s1 + $0x74] sm:$0xf]
      %v324 = vld [vmem:[%s1 + $0x78] sm:$0xf]
      %v325 = vld [vmem:[%s1 + $0x7c] sm:$0xf]
      %v326 = vld [vmem:[%s1 + $0x80] sm:$0xf]
      %v327 = vld [vmem:[%s1 + $0x84] sm:$0xf]
      %v328 = vld [vmem:[%s1 + $0x88] sm:$0xf]
      %v329 = vld [vmem:[%s1 + $0x8c] sm:$0xf]
      %v330 = vld [vmem:[%s1 + $0x90] sm:$0xf]
      %v331 = vld [vmem:[%s1 + $0x94] sm:$0xf]
      %v332 = vld [vmem:[%s1 + $0x98] sm:$0xf]
      %v333 = vld [vmem:[%s1 + $0x9c] sm:$0xf]
      %v334 = vld [vmem:[%s1 + $0xa0] sm:$0xf]
      %v335 = vld [vmem:[%s1 + $0xa4] sm:$0xf]
      %v336 = vld [vmem:[%s1 + $0xa8] sm:$0xf]
      %v337 = vld [vmem:[%s1 + $0xac] sm:$0xf]
      %v338 = vld [vmem:[%s1 + $0xb0] sm:$0xf]
      %v339 = vld [vmem:[%s1 + $0xb4] sm:$0xf]
      %v340 = vld [vmem:[%s1 + $0xb8] sm:$0xf]
      %v341 = vld [vmem:[%s1 + $0xbc] sm:$0xf]
      %v342 = vld [vmem:[%s1 + $0xc0] sm:$0xf]
      %v343 = vld [vmem:[%s1 + $0xc4] sm:$0xf]
      %v344 = vld [vmem:[%s1 + $0xc8] sm:$0xf]
      %v345 = vld [vmem:[%s1 + $0xcc] sm:$0xf]
      %v346 = vld [vmem:[%s1 + $0xd0] sm:$0xf]
      %v347 = vld [vmem:[%s1 + $0xd4] sm:$0xf]
      %v348 = vld [vmem:[%s1 + $0xd8] sm:$0xf]
      %v349 = vld [vmem:[%s1 + $0xdc] sm:$0xf]
      %v350 = vld [vmem:[%s1 + $0xe0] sm:$0xf]
      %v351 = vld [vmem:[%s1 + $0xe4] sm:$0xf]
      %v352 = vld [vmem:[%s1 + $0xe8] sm:$0xf]
      %v353 = vld [vmem:[%s1 + $0xec] sm:$0xf]
      %v354 = vld [vmem:[%s1 + $0xf0] sm:$0xf]
      %v355 = vld [vmem:[%s1 + $0xf4] sm:$0xf]
      %v356 = vld [vmem:[%s1 + $0xf8] sm:$0xf]
      %v357 = vld [vmem:[%s1 + $0xfc] sm:$0xf]
      %v358 = vld [vmem:[%s1 + $0x100] sm:$0xf]
      %v359 = vld [vmem:[%s1 + $0x104] sm:$0xf]
      %v360 = vld [vmem:[%s1 + $0x108] sm:$0xf]
      %v361 = vld [vmem:[%s1 + $0x10c] sm:$0xf]
      %v362 = vld [vmem:[%s1 + $0x110] sm:$0xf]
      %v363 = vld [vmem:[%s1 + $0x114] sm:$0xf]
      %v364 = vld [vmem:[%s1 + $0x118] sm:$0xf]
      %v365 = vld [vmem:[%s1 + $0x11c] sm:$0xf]
      %v366 = vld [vmem:[%s1 + $0x120] sm:$0xf]
      %v367 = vld [vmem:[%s1 + $0x124] sm:$0xf]
      %v368 = vld [vmem:[%s1 + $0x128] sm:$0xf]
      %v369 = vld [vmem:[%s1 + $0x12c] sm:$0xf]
      %v370 = vld [vmem:[%s1 + $0x130] sm:$0xf]
      %v371 = vld [vmem:[%s1 + $0x134] sm:$0xf]
      %v372 = vld [vmem:[%s1 + $0x138] sm:$0xf]
      %v373 = vld [vmem:[%s1 + $0x13c] sm:$0xf]
      %v374 = vld [vmem:[%s1 + $0x140] sm:$0xf]
      %v375 = vld [vmem:[%s1 + $0x144] sm:$0xf]
      %v376 = vld [vmem:[%s1 + $0x148] sm:$0xf]
      %v377 = vld [vmem:[%s1 + $0x14c] sm:$0xf]
      %v378 = vld [vmem:[%s1 + $0x150] sm:$0xf]
      %v379 = vld [vmem:[%s1 + $0x154] sm:$0xf]
      %v380 = vld [vmem:[%s1 + $0x158] sm:$0xf]
      %v381 = vld [vmem:[%s1 + $0x15c] sm:$0xf]
      %v382 = vld [vmem:[%s1 + $0x160] sm:$0xf]
      %v383 = vld [vmem:[%s1 + $0x164] sm:$0xf]
      %v384 = vld [vmem:[%s1 + $0x168] sm:$0xf]
      %v385 = vld [vmem:[%s1 + $0x16c] sm:$0xf]
      %v386 = vld [vmem:[%s1 + $0x170] sm:$0xf]
      %v387 = vld [vmem:[%s1 + $0x174] sm:$0xf]
      %v388 = vld [vmem:[%s1 + $0x178] sm:$0xf]
      %v389 = vld [vmem:[%s1 + $0x17c] sm:$0xf]
      %v390 = vlaneseq
      %v391 = vshrl.u32 %v390, 7
      %v392 = vsub.s32 0, %v391
      %v393 = vrot.slane %v264, %v392
      %v490 = vunpack.c.l.b16 %v294
      %v491 = vunpack.c.l.b16 %v295
      %v492 = vunpack.c.l.b16 %v296
      %v493 = vunpack.c.l.b16 %v297
      %v494 = vunpack.c.l.b16 %v298
      %v495 = vunpack.c.l.b16 %v299
      %v496 = vunpack.c.l.b16 %v300
      %v497 = vunpack.c.l.b16 %v301
      %v498 = vunpack.c.l.b16 %v302
      %v499 = vunpack.c.l.b16 %v303
      %v500 = vunpack.c.l.b16 %v304
      %v501 = vunpack.c.l.b16 %v305
      %v502 = vunpack.c.l.b16 %v306
      %v503 = vunpack.c.l.b16 %v307
      %v504 = vunpack.c.l.b16 %v308
      %v505 = vunpack.c.l.b16 %v309
      %v506 = vunpack.c.l.b16 %v310
      %v507 = vunpack.c.l.b16 %v311
      %v508 = vunpack.c.l.b16 %v312
      %v509 = vunpack.c.l.b16 %v313
      %v510 = vunpack.c.l.b16 %v314
      %v511 = vunpack.c.l.b16 %v315
      %v512 = vunpack.c.l.b16 %v316
      %v513 = vunpack.c.l.b16 %v317
      %v514 = vunpack.c.l.b16 %v318
      %v515 = vunpack.c.l.b16 %v319
      %v516 = vunpack.c.l.b16 %v320
      %v517 = vunpack.c.l.b16 %v321
      %v518 = vunpack.c.l.b16 %v322
      %v519 = vunpack.c.l.b16 %v323
      %v520 = vunpack.c.l.b16 %v324
      %v521 = vunpack.c.l.b16 %v325
      %v522 = vunpack.c.l.b16 %v326
      %v523 = vunpack.c.l.b16 %v327
      %v524 = vunpack.c.l.b16 %v328
      %v525 = vunpack.c.l.b16 %v329
      %v526 = vunpack.c.l.b16 %v330
      %v527 = vunpack.c.l.b16 %v331
      %v528 = vunpack.c.l.b16 %v332
      %v529 = vunpack.c.l.b16 %v333
      %v530 = vunpack.c.l.b16 %v334
      %v531 = vunpack.c.l.b16 %v335
      %v532 = vunpack.c.l.b16 %v336
      %v533 = vunpack.c.l.b16 %v337
      %v534 = vunpack.c.l.b16 %v338
      %v535 = vunpack.c.l.b16 %v339
      %v536 = vunpack.c.l.b16 %v340
      %v537 = vunpack.c.l.b16 %v341
      %v538 = vunpack.c.l.b16 %v342
      %v539 = vunpack.c.l.b16 %v343
      %v540 = vunpack.c.l.b16 %v344
      %v541 = vunpack.c.l.b16 %v345
      %v542 = vunpack.c.l.b16 %v346
      %v543 = vunpack.c.l.b16 %v347
      %v544 = vunpack.c.l.b16 %v348
      %v545 = vunpack.c.l.b16 %v349
      %v546 = vunpack.c.l.b16 %v350
      %v547 = vunpack.c.l.b16 %v351
      %v548 = vunpack.c.l.b16 %v352
      %v549 = vunpack.c.l.b16 %v353
      %v550 = vunpack.c.l.b16 %v354
      %v551 = vunpack.c.l.b16 %v355
      %v552 = vunpack.c.l.b16 %v356
      %v553 = vunpack.c.l.b16 %v357
      %v554 = vunpack.c.l.b16 %v358
      %v555 = vunpack.c.l.b16 %v359
      %v556 = vunpack.c.l.b16 %v360
      %v557 = vunpack.c.l.b16 %v361
      %v558 = vunpack.c.l.b16 %v362
      %v559 = vunpack.c.l.b16 %v363
      %v560 = vunpack.c.l.b16 %v364
      %v561 = vunpack.c.l.b16 %v365
      %v562 = vunpack.c.l.b16 %v366
      %v563 = vunpack.c.l.b16 %v367
      %v564 = vunpack.c.l.b16 %v368
      %v565 = vunpack.c.l.b16 %v369
      %v566 = vunpack.c.l.b16 %v370
      %v567 = vunpack.c.l.b16 %v371
      %v568 = vunpack.c.l.b16 %v372
      %v569 = vunpack.c.l.b16 %v373
      %v570 = vunpack.c.l.b16 %v374
      %v571 = vunpack.c.l.b16 %v375
      %v572 = vunpack.c.l.b16 %v376
      %v573 = vunpack.c.l.b16 %v377
      %v574 = vunpack.c.l.b16 %v378
      %v575 = vunpack.c.l.b16 %v379
      %v576 = vunpack.c.l.b16 %v380
      %v577 = vunpack.c.l.b16 %v381
      %v578 = vunpack.c.l.b16 %v382
      %v579 = vunpack.c.l.b16 %v383
      %v580 = vunpack.c.l.b16 %v384
      %v581 = vunpack.c.l.b16 %v385
      %v582 = vunpack.c.l.b16 %v386
      %v583 = vunpack.c.l.b16 %v387
      %v584 = vunpack.c.l.b16 %v388
      %v585 = vunpack.c.l.b16 %v389
      %v586 = vpack.c.b16 %v491, %v490
      %v587 = vpack.c.b16 %v493, %v492
      %v588 = vpack.c.b16 %v495, %v494
      %v589 = vpack.c.b16 %v497, %v496
      %v590 = vpack.c.b16 %v499, %v498
      %v591 = vpack.c.b16 %v501, %v500
      %v592 = vpack.c.b16 %v503, %v502
      %v593 = vpack.c.b16 %v505, %v504
      %v594 = vpack.c.b16 %v507, %v506
      %v595 = vpack.c.b16 %v509, %v508
      %v596 = vpack.c.b16 %v511, %v510
      %v597 = vpack.c.b16 %v513, %v512
      %v598 = vpack.c.b16 %v515, %v514
      %v599 = vpack.c.b16 %v517, %v516
      %v600 = vpack.c.b16 %v519, %v518
      %v601 = vpack.c.b16 %v521, %v520
      %v602 = vpack.c.b16 %v523, %v522
      %v603 = vpack.c.b16 %v525, %v524
      %v604 = vpack.c.b16 %v527, %v526
      %v605 = vpack.c.b16 %v529, %v528
      %v606 = vpack.c.b16 %v531, %v530
      %v607 = vpack.c.b16 %v533, %v532
      %v608 = vpack.c.b16 %v535, %v534
      %v609 = vpack.c.b16 %v537, %v536
      %v610 = vpack.c.b16 %v539, %v538
      %v611 = vpack.c.b16 %v541, %v540
      %v612 = vpack.c.b16 %v543, %v542
      %v613 = vpack.c.b16 %v545, %v544
      %v614 = vpack.c.b16 %v547, %v546
      %v615 = vpack.c.b16 %v549, %v548
      %v616 = vpack.c.b16 %v551, %v550
      %v617 = vpack.c.b16 %v553, %v552
      %v618 = vpack.c.b16 %v555, %v554
      %v619 = vpack.c.b16 %v557, %v556
      %v620 = vpack.c.b16 %v559, %v558
      %v621 = vpack.c.b16 %v561, %v560
      %v622 = vpack.c.b16 %v563, %v562
      %v623 = vpack.c.b16 %v565, %v564
      %v624 = vpack.c.b16 %v567, %v566
      %v625 = vpack.c.b16 %v569, %v568
      %v626 = vpack.c.b16 %v571, %v570
      %v627 = vpack.c.b16 %v573, %v572
      %v628 = vpack.c.b16 %v575, %v574
      %v629 = vpack.c.b16 %v577, %v576
      %v630 = vpack.c.b16 %v579, %v578
      %v631 = vpack.c.b16 %v581, %v580
      %v632 = vpack.c.b16 %v583, %v582
      %v633 = vpack.c.b16 %v585, %v584
      %682 = vmatprep.subr.bf16.mxu0 0
      %683 = vmatpush1.bf16.msra.mxu0 %v586
      %684 = vmatprep.subr.bf16.mxu0 0
      %685 = vmatpush1.bf16.msra.mxu0 %v587
      %686 = vmatprep.subr.bf16.mxu0 0
      %687 = vmatpush1.bf16.msra.mxu0 %v588
      %688 = vmatprep.subr.bf16.mxu0 0
      %689 = vmatpush1.bf16.msra.mxu0 %v589
      %690 = vmatprep.subr.bf16.mxu0 0
      %691 = vmatpush1.bf16.msra.mxu0 %v590
      %692 = vmatprep.subr.bf16.mxu0 0
      %693 = vmatpush1.bf16.msra.mxu0 %v591
      %694 = vmatprep.subr.bf16.mxu0 0
      %695 = vmatpush1.bf16.msra.mxu0 %v592
      %696 = vmatprep.subr.bf16.mxu0 0
      %697 = vmatpush1.bf16.msra.mxu0 %v593
      %698 = vmatprep.subr.bf16.mxu0 0
      %699 = vmatpush1.bf16.msra.mxu0 %v594
      %700 = vmatprep.subr.bf16.mxu0 0
      %701 = vmatpush1.bf16.msra.mxu0 %v595
      %702 = vmatprep.subr.bf16.mxu0 0
      %703 = vmatpush1.bf16.msra.mxu0 %v596
      %704 = vmatprep.subr.bf16.mxu0 0
      %705 = vmatpush1.bf16.msra.mxu0 %v597
      %706 = vmatprep.subr.bf16.mxu0 0
      %707 = vmatpush1.bf16.msra.mxu0 %v598
      %708 = vmatprep.subr.bf16.mxu0 0
      %709 = vmatpush1.bf16.msra.mxu0 %v599
      %710 = vmatprep.subr.bf16.mxu0 0
      %711 = vmatpush1.bf16.msra.mxu0 %v600
      %712 = vmatprep.subr.bf16.mxu0 0
      %713 = vmatpush1.bf16.msra.mxu0 %v601
      %714 = vmatprep.mubr.bf16.mxu0 %v289
      %715 = vmatmul.mubr.bf16.gmra.mrb[0].mxu0 %v288
      %v716 = vpop.f32.mrb[0].mxu0
      %v717 = vadd.f32 %v393, %v716
      %v718 = vpop.f32.mrb[0].mxu0
      %v719 = vpop.f32.mrb[0].mxu0
      %v720 = vpop.f32.mrb[0].mxu0
      %721 = vdwg.mxu0
      %722 = vmatprep.subr.bf16.mxu0 0
      %723 = vmatpush1.bf16.msra.mxu0 %v602
      %724 = vmatprep.subr.bf16.mxu0 0
      %725 = vmatpush1.bf16.msra.mxu0 %v603
      %726 = vmatprep.subr.bf16.mxu0 0
      %727 = vmatpush1.bf16.msra.mxu0 %v604
      %728 = vmatprep.subr.bf16.mxu0 0
      %729 = vmatpush1.bf16.msra.mxu0 %v605
      %730 = vmatprep.subr.bf16.mxu0 0
      %731 = vmatpush1.bf16.msra.mxu0 %v606
      %732 = vmatprep.subr.bf16.mxu0 0
      %733 = vmatpush1.bf16.msra.mxu0 %v607
      %734 = vmatprep.subr.bf16.mxu0 0
      %735 = vmatpush1.bf16.msra.mxu0 %v608
      %736 = vmatprep.subr.bf16.mxu0 0
      %737 = vmatpush1.bf16.msra.mxu0 %v609
      %738 = vmatprep.subr.bf16.mxu0 0
      %739 = vmatpush1.bf16.msra.mxu0 %v610
      %740 = vmatprep.subr.bf16.mxu0 0
      %741 = vmatpush1.bf16.msra.mxu0 %v611
      %742 = vmatprep.subr.bf16.mxu0 0
      %743 = vmatpush1.bf16.msra.mxu0 %v612
      %744 = vmatprep.subr.bf16.mxu0 0
      %745 = vmatpush1.bf16.msra.mxu0 %v613
      %746 = vmatprep.subr.bf16.mxu0 0
      %747 = vmatpush1.bf16.msra.mxu0 %v614
      %748 = vmatprep.subr.bf16.mxu0 0
      %749 = vmatpush1.bf16.msra.mxu0 %v615
      %750 = vmatprep.subr.bf16.mxu0 0
      %751 = vmatpush1.bf16.msra.mxu0 %v616
      %752 = vmatprep.subr.bf16.mxu0 0
      %753 = vmatpush1.bf16.msra.mxu0 %v617
      %754 = vmatprep.mubr.bf16.mxu0 %v291
      %755 = vmatmul.mubr.bf16.gmra.mrb[0].mxu0 %v290
      %v756 = vpop.f32.mrb[0].mxu0
      %v757 = vadd.f32 %v717, %v756
      %v758 = vpop.f32.mrb[0].mxu0
      %v759 = vpop.f32.mrb[0].mxu0
      %v760 = vpop.f32.mrb[0].mxu0
      %761 = vdwg.mxu0
      %762 = vmatprep.subr.bf16.mxu0 0
      %763 = vmatpush1.bf16.msra.mxu0 %v618
      %764 = vmatprep.subr.bf16.mxu0 0
      %765 = vmatpush1.bf16.msra.mxu0 %v619
      %766 = vmatprep.subr.bf16.mxu0 0
      %767 = vmatpush1.bf16.msra.mxu0 %v620
      %768 = vmatprep.subr.bf16.mxu0 0
      %769 = vmatpush1.bf16.msra.mxu0 %v621
      %770 = vmatprep.subr.bf16.mxu0 0
      %771 = vmatpush1.bf16.msra.mxu0 %v622
      %772 = vmatprep.subr.bf16.mxu0 0
      %773 = vmatpush1.bf16.msra.mxu0 %v623
      %774 = vmatprep.subr.bf16.mxu0 0
      %775 = vmatpush1.bf16.msra.mxu0 %v624
      %776 = vmatprep.subr.bf16.mxu0 0
      %777 = vmatpush1.bf16.msra.mxu0 %v625
      %778 = vmatprep.subr.bf16.mxu0 0
      %779 = vmatpush1.bf16.msra.mxu0 %v626
      %780 = vmatprep.subr.bf16.mxu0 0
      %781 = vmatpush1.bf16.msra.mxu0 %v627
      %782 = vmatprep.subr.bf16.mxu0 0
      %783 = vmatpush1.bf16.msra.mxu0 %v628
      %784 = vmatprep.subr.bf16.mxu0 0
      %785 = vmatpush1.bf16.msra.mxu0 %v629
      %786 = vmatprep.subr.bf16.mxu0 0
      %787 = vmatpush1.bf16.msra.mxu0 %v630
      %788 = vmatprep.subr.bf16.mxu0 0
      %789 = vmatpush1.bf16.msra.mxu0 %v631
      %790 = vmatprep.subr.bf16.mxu0 0
      %791 = vmatpush1.bf16.msra.mxu0 %v632
      %792 = vmatprep.subr.bf16.mxu0 0
      %793 = vmatpush1.bf16.msra.mxu0 %v633
      %794 = vmatprep.mubr.bf16.mxu0 %v293
      %795 = vmatmul.mubr.bf16.gmra.mrb[0].mxu0 %v292
      %v796 = vpop.f32.mrb[0].mxu0
      %v797 = vadd.f32 %v757, %v796
      %v798 = vpop.f32.mrb[0].mxu0
      %v799 = vpop.f32.mrb[0].mxu0
      %v800 = vpop.f32.mrb[0].mxu0
      %801 = vdwg.mxu0
      %vm802 = vcmp.ge.f32.partialorder %v797, 0.0
      %v803 = vmul.f32 %v797, 0.01
      %v804 = vsel %vm802, %v797, %v803
      %v805 = vpack.c.bf16 %v804, %v804
      %v806 = vld [vmem:[%s2] sm:$0xf]
      %v807 = vld [vmem:[%s2 + $0x4] sm:$0xf]
      %v808 = vld [vmem:[%s2 + $0x8] sm:$0xf]
      %v809 = vld [vmem:[%s2 + $0xc] sm:$0xf]
      %v810 = vld [vmem:[%s2 + $0x10] sm:$0xf]
      %v811 = vld [vmem:[%s2 + $0x14] sm:$0xf]
      %v812 = vld [vmem:[%s2 + $0x18] sm:$0xf]
      %v813 = vld [vmem:[%s2 + $0x1c] sm:$0xf]
      %v814 = vld [vmem:[%s2 + $0x20] sm:$0xf]
      %v815 = vld [vmem:[%s2 + $0x24] sm:$0xf]
      %v816 = vld [vmem:[%s2 + $0x28] sm:$0xf]
      %v817 = vld [vmem:[%s2 + $0x2c] sm:$0xf]
      %v818 = vld [vmem:[%s2 + $0x30] sm:$0xf]
      %v819 = vld [vmem:[%s2 + $0x34] sm:$0xf]
      %v820 = vld [vmem:[%s2 + $0x38] sm:$0xf]
      %v821 = vld [vmem:[%s2 + $0x3c] sm:$0xf]
      %v822 = vlaneseq
      %v823 = vshrl.u32 %v822, 7
      %v824 = vsub.s32 1, %v823
      %v825 = vrot.slane %v264, %v824
      %v842 = vunpack.c.l.b16 %v806
      %v843 = vunpack.c.l.b16 %v807
      %v844 = vunpack.c.l.b16 %v808
      %v845 = vunpack.c.l.b16 %v809
      %v846 = vunpack.c.l.b16 %v810
      %v847 = vunpack.c.l.b16 %v811
      %v848 = vunpack.c.l.b16 %v812
      %v849 = vunpack.c.l.b16 %v813
      %v850 = vunpack.c.l.b16 %v814
      %v851 = vunpack.c.l.b16 %v815
      %v852 = vunpack.c.l.b16 %v816
      %v853 = vunpack.c.l.b16 %v817
      %v854 = vunpack.c.l.b16 %v818
      %v855 = vunpack.c.l.b16 %v819
      %v856 = vunpack.c.l.b16 %v820
      %v857 = vunpack.c.l.b16 %v821
      %v858 = vpack.c.b16 %v843, %v842
      %v859 = vpack.c.b16 %v845, %v844
      %v860 = vpack.c.b16 %v847, %v846
      %v861 = vpack.c.b16 %v849, %v848
      %v862 = vpack.c.b16 %v851, %v850
      %v863 = vpack.c.b16 %v853, %v852
      %v864 = vpack.c.b16 %v855, %v854
      %v865 = vpack.c.b16 %v857, %v856
      %874 = vmatprep.subr.bf16.mxu0 0
      %875 = vmatpush1.bf16.msra.mxu0 %v858
      %876 = vmatprep.subr.bf16.mxu0 0
      %877 = vmatpush1.bf16.msra.mxu0 %v859
      %878 = vmatprep.subr.bf16.mxu0 0
      %879 = vmatpush1.bf16.msra.mxu0 %v860
      %880 = vmatprep.subr.bf16.mxu0 0
      %881 = vmatpush1.bf16.msra.mxu0 %v861
      %882 = vmatprep.subr.bf16.mxu0 0
      %883 = vmatpush1.bf16.msra.mxu0 %v862
      %884 = vmatprep.subr.bf16.mxu0 0
      %885 = vmatpush1.bf16.msra.mxu0 %v863
      %886 = vmatprep.subr.bf16.mxu0 0
      %887 = vmatpush1.bf16.msra.mxu0 %v864
      %888 = vmatprep.subr.bf16.mxu0 0
      %889 = vmatpush1.bf16.msra.mxu0 %v865
      %890 = vmatprep.subr.bf16.mxu0 0
      %891 = vmatpush1.bf16.msra.mxu0 0
      %892 = vmatprep.subr.bf16.mxu0 0
      %893 = vmatpush1.bf16.msra.mxu0 0
      %894 = vmatprep.subr.bf16.mxu0 0
      %895 = vmatpush1.bf16.msra.mxu0 0
      %896 = vmatprep.subr.bf16.mxu0 0
      %897 = vmatpush1.bf16.msra.mxu0 0
      %898 = vmatprep.subr.bf16.mxu0 0
      %899 = vmatpush1.bf16.msra.mxu0 0
      %900 = vmatprep.subr.bf16.mxu0 0
      %901 = vmatpush1.bf16.msra.mxu0 0
      %902 = vmatprep.subr.bf16.mxu0 0
      %903 = vmatpush1.bf16.msra.mxu0 0
      %904 = vmatprep.subr.bf16.mxu0 0
      %905 = vmatpush1.bf16.msra.mxu0 0
      %906 = vmatprep.mubr.bf16.mxu0 0
      %907 = vmatmul.mubr.bf16.gmra.mrb[0].mxu0 %v805
      %v908 = vpop.f32.mrb[0].mxu0
      %v909 = vadd.f32 %v825, %v908
      %v910 = vpop.f32.mrb[0].mxu0
      %v911 = vpop.f32.mrb[0].mxu0
      %v912 = vpop.f32.mrb[0].mxu0
      %913 = vdwg.mxu0
      %vm914 = vcmp.ge.f32.partialorder %v909, 0.0
      %v915 = vmul.f32 %v909, 0.01
      %v916 = vsel %vm914, %v909, %v915
      %918 = vrot.lane.b32.xlu0 %v265, 64
      %v919 = vpop.permute.xlu0 %918
      %v921 = vadd.f32 %v909, %v919
      %v922 = vpack.c.bf16 %v921, %v921
      %924 = vrot.lane.b32.xlu0 %v922, 64
      %v925 = vpop.permute.xlu0 %924
      %v930 = vunpack.c.l.b16 %v266
      %v931 = vunpack.c.l.b16 %v267
      %v932 = vunpack.c.l.b16 %v268
      %v933 = vunpack.c.l.b16 %v269
      %v934 = vpack.c.b16 %v931, %v930
      %v935 = vpack.c.b16 %v933, %v932
      %vm938 = vcmask 261120
      %v940 = vsel %vm938, %v925, 0
      %942 = vmatprep.subr.bf16.mxu0 0
      %943 = vmatpush1.bf16.msra.mxu0 %v934
      %944 = vmatprep.subr.bf16.mxu0 0
      %945 = vmatpush1.bf16.msra.mxu0 %v935
      %946 = vmatprep.subr.bf16.mxu0 0
      %947 = vmatpush1.bf16.msra.mxu0 0
      %948 = vmatprep.subr.bf16.mxu0 0
      %949 = vmatpush1.bf16.msra.mxu0 0
      %950 = vmatprep.subr.bf16.mxu0 0
      %951 = vmatpush1.bf16.msra.mxu0 0
      %952 = vmatprep.subr.bf16.mxu0 0
      %953 = vmatpush1.bf16.msra.mxu0 0
      %954 = vmatprep.subr.bf16.mxu0 0
      %955 = vmatpush1.bf16.msra.mxu0 0
      %956 = vmatprep.subr.bf16.mxu0 0
      %957 = vmatpush1.bf16.msra.mxu0 0
      %958 = vmatprep.subr.bf16.mxu0 0
      %959 = vmatpush1.bf16.msra.mxu0 0
      %960 = vmatprep.subr.bf16.mxu0 0
      %961 = vmatpush1.bf16.msra.mxu0 0
      %962 = vmatprep.subr.bf16.mxu0 0
      %963 = vmatpush1.bf16.msra.mxu0 0
      %964 = vmatprep.subr.bf16.mxu0 0
      %965 = vmatpush1.bf16.msra.mxu0 0
      %966 = vmatprep.subr.bf16.mxu0 0
      %967 = vmatpush1.bf16.msra.mxu0 0
      %968 = vmatprep.subr.bf16.mxu0 0
      %969 = vmatpush1.bf16.msra.mxu0 0
      %970 = vmatprep.subr.bf16.mxu0 0
      %971 = vmatpush1.bf16.msra.mxu0 0
      %972 = vmatprep.subr.bf16.mxu0 0
      %973 = vmatpush1.bf16.msra.mxu0 0
      %974 = vmatprep.mubr.bf16.mxu0 0
      %975 = vmatmul.mubr.bf16.gmra.mrb[0].mxu0 %v940
      %v976 = vpop.f32.mrb[0].mxu0
      %v977 = vadd.f32 0.0, %v976
      %v978 = vpop.f32.mrb[0].mxu0
      %v979 = vpop.f32.mrb[0].mxu0
      %v980 = vpop.f32.mrb[0].mxu0
      %981 = vdwg.mxu0
      %v982 = vlaneseq
      %v983 = vshrl.u32 %v982, 7
      %v984 = vsub.s32 2, %v983
      %v985 = vrot.slane %v264, %v984
      %v986 = vadd.f32 %v977, %v985
      %988 = vrot.lane.b32.xlu0 %v986, 120
      %v989 = vpop.permute.xlu0 %988
      %991 = vrot.lane.b32.xlu0 %v986, 112
      %v992 = vpop.permute.xlu0 %991
      %994 = vrot.lane.b32.xlu0 %v986, 104
      %v995 = vpop.permute.xlu0 %994
      %v997 = vpack.c.bf16 %v986, %v986
      %v998 = vpack.c.bf16 %v989, %v989
      %v999 = vpack.c.bf16 %v992, %v992
      %v1000 = vpack.c.bf16 %v995, %v995
      %1002 = vrot.lane.b32.xlu0 %v997, 96
      %v1003 = vpop.permute.xlu0 %1002
      %vm1004 = vcmask 64512
      %v1006 = vsel %vm1004, %v997, 0
      %v1009 = vsel %vm1004, %v1003, 0
      %1011 = vmatprep.subr.bf16.mxu0 0
      %1012 = vmatpush1.bf16.xpose.msra.mxu0 %v1009
      %1013 = vmatprep.subr.bf16.mxu0 0
      %1014 = vmatpush1.bf16.xpose.msra.mxu0 0
      %1015 = vmatprep.subr.bf16.mxu0 0
      %1016 = vmatpush1.bf16.xpose.msra.mxu0 0
      %1017 = vmatprep.subr.bf16.mxu0 0
      %1018 = vmatpush1.bf16.xpose.msra.mxu0 0
      %1019 = vmatprep.subr.bf16.mxu0 0
      %1020 = vmatpush1.bf16.xpose.msra.mxu0 0
      %1021 = vmatprep.subr.bf16.mxu0 0
      %1022 = vmatpush1.bf16.xpose.msra.mxu0 0
      %1023 = vmatprep.subr.bf16.mxu0 0
      %1024 = vmatpush1.bf16.xpose.msra.mxu0 0
      %1025 = vmatprep.subr.bf16.mxu0 0
      %1026 = vmatpush1.bf16.xpose.msra.mxu0 0
      %1027 = vmatprep.subr.bf16.mxu0 0
      %1028 = vmatpush1.bf16.xpose.msra.mxu0 0
      %1029 = vmatprep.subr.bf16.mxu0 0
      %1030 = vmatpush1.bf16.xpose.msra.mxu0 0
      %1031 = vmatprep.subr.bf16.mxu0 0
      %1032 = vmatpush1.bf16.xpose.msra.mxu0 0
      %1033 = vmatprep.subr.bf16.mxu0 0
      %1034 = vmatpush1.bf16.xpose.msra.mxu0 0
      %1035 = vmatprep.subr.bf16.mxu0 0
      %1036 = vmatpush1.bf16.xpose.msra.mxu0 0
      %1037 = vmatprep.subr.bf16.mxu0 0
      %1038 = vmatpush1.bf16.xpose.msra.mxu0 0
      %1039 = vmatprep.subr.bf16.mxu0 0
      %1040 = vmatpush1.bf16.xpose.msra.mxu0 0
      %1041 = vmatprep.subr.bf16.mxu0 0
      %1042 = vmatpush1.bf16.xpose.msra.mxu0 0
      %1043 = vmatprep.mubr.bf16.mxu0 0
      %1044 = vmatmul.mubr.bf16.gmra.mrb[0].mxu0 %v1006
      %v1045 = vpop.f32.mrb[0].mxu0
      %v1046 = vadd.f32 0.0, %v1045
      %v1047 = vpop.f32.mrb[0].mxu0
      %v1048 = vpop.f32.mrb[0].mxu0
      %v1049 = vpop.f32.mrb[0].mxu0
      %1050 = vdwg.mxu0
      %1052 = vrot.lane.b32.xlu0 %v998, 96
      %v1053 = vpop.permute.xlu0 %1052
      %v1055 = vsel %vm1004, %v998, 0
      %v1058 = vsel %vm1004, %v1053, 0
      %1060 = vmatprep.subr.bf16.mxu0 0
      %1061 = vmatpush1.bf16.xpose.msra.mxu0 %v1058
      %1062 = vmatprep.subr.bf16.mxu0 0
      %1063 = vmatpush1.bf16.xpose.msra.mxu0 0
      %1064 = vmatprep.subr.bf16.mxu0 0
      %1065 = vmatpush1.bf16.xpose.msra.mxu0 0
      %1066 = vmatprep.subr.bf16.mxu0 0
      %1067 = vmatpush1.bf16.xpose.msra.mxu0 0
      %1068 = vmatprep.subr.bf16.mxu0 0
      %1069 = vmatpush1.bf16.xpose.msra.mxu0 0
      %1070 = vmatprep.subr.bf16.mxu0 0
      %1071 = vmatpush1.bf16.xpose.msra.mxu0 0
      %1072 = vmatprep.subr.bf16.mxu0 0
      %1073 = vmatpush1.bf16.xpose.msra.mxu0 0
      %1074 = vmatprep.subr.bf16.mxu0 0
      %1075 = vmatpush1.bf16.xpose.msra.mxu0 0
      %1076 = vmatprep.subr.bf16.mxu0 0
      %1077 = vmatpush1.bf16.xpose.msra.mxu0 0
      %1078 = vmatprep.subr.bf16.mxu0 0
      %1079 = vmatpush1.bf16.xpose.msra.mxu0 0
      %1080 = vmatprep.subr.bf16.mxu0 0
      %1081 = vmatpush1.bf16.xpose.msra.mxu0 0
      %1082 = vmatprep.subr.bf16.mxu0 0
      %1083 = vmatpush1.bf16.xpose.msra.mxu0 0
      %1084 = vmatprep.subr.bf16.mxu0 0
      %1085 = vmatpush1.bf16.xpose.msra.mxu0 0
      %1086 = vmatprep.subr.bf16.mxu0 0
      %1087 = vmatpush1.bf16.xpose.msra.mxu0 0
      %1088 = vmatprep.subr.bf16.mxu0 0
      %1089 = vmatpush1.bf16.xpose.msra.mxu0 0
      %1090 = vmatprep.subr.bf16.mxu0 0
      %1091 = vmatpush1.bf16.xpose.msra.mxu0 0
      %1092 = vmatprep.mubr.bf16.mxu0 0
      %1093 = vmatmul.mubr.bf16.gmra.mrb[0].mxu0 %v1055
      %v1094 = vpop.f32.mrb[0].mxu0
      %v1095 = vadd.f32 0.0, %v1094
      %v1096 = vpop.f32.mrb[0].mxu0
      %v1097 = vpop.f32.mrb[0].mxu0
      %v1098 = vpop.f32.mrb[0].mxu0
      %1099 = vdwg.mxu0
      %1101 = vrot.lane.b32.xlu0 %v999, 96
      %v1102 = vpop.permute.xlu0 %1101
      %v1104 = vsel %vm1004, %v999, 0
      %v1107 = vsel %vm1004, %v1102, 0
      %1109 = vmatprep.subr.bf16.mxu0 0
      %1110 = vmatpush1.bf16.xpose.msra.mxu0 %v1107
      %1111 = vmatprep.subr.bf16.mxu0 0
      %1112 = vmatpush1.bf16.xpose.msra.mxu0 0
      %1113 = vmatprep.subr.bf16.mxu0 0
      %1114 = vmatpush1.bf16.xpose.msra.mxu0 0
      %1115 = vmatprep.subr.bf16.mxu0 0
      %1116 = vmatpush1.bf16.xpose.msra.mxu0 0
      %1117 = vmatprep.subr.bf16.mxu0 0
      %1118 = vmatpush1.bf16.xpose.msra.mxu0 0
      %1119 = vmatprep.subr.bf16.mxu0 0
      %1120 = vmatpush1.bf16.xpose.msra.mxu0 0
      %1121 = vmatprep.subr.bf16.mxu0 0
      %1122 = vmatpush1.bf16.xpose.msra.mxu0 0
      %1123 = vmatprep.subr.bf16.mxu0 0
      %1124 = vmatpush1.bf16.xpose.msra.mxu0 0
      %1125 = vmatprep.subr.bf16.mxu0 0
      %1126 = vmatpush1.bf16.xpose.msra.mxu0 0
      %1127 = vmatprep.subr.bf16.mxu0 0
      %1128 = vmatpush1.bf16.xpose.msra.mxu0 0
      %1129 = vmatprep.subr.bf16.mxu0 0
      %1130 = vmatpush1.bf16.xpose.msra.mxu0 0
      %1131 = vmatprep.subr.bf16.mxu0 0
      %1132 = vmatpush1.bf16.xpose.msra.mxu0 0
      %1133 = vmatprep.subr.bf16.mxu0 0
      %1134 = vmatpush1.bf16.xpose.msra.mxu0 0
      %1135 = vmatprep.subr.bf16.mxu0 0
      %1136 = vmatpush1.bf16.xpose.msra.mxu0 0
      %1137 = vmatprep.subr.bf16.mxu0 0
      %1138 = vmatpush1.bf16.xpose.msra.mxu0 0
      %1139 = vmatprep.subr.bf16.mxu0 0
      %1140 = vmatpush1.bf16.xpose.msra.mxu0 0
      %1141 = vmatprep.mubr.bf16.mxu0 0
      %1142 = vmatmul.mubr.bf16.gmra.mrb[0].mxu0 %v1104
      %v1143 = vpop.f32.mrb[0].mxu0
      %v1144 = vadd.f32 0.0, %v1143
      %v1145 = vpop.f32.mrb[0].mxu0
      %v1146 = vpop.f32.mrb[0].mxu0
      %v1147 = vpop.f32.mrb[0].mxu0
      %1148 = vdwg.mxu0
      %1150 = vrot.lane.b32.xlu0 %v1000, 96
      %v1151 = vpop.permute.xlu0 %1150
      %v1153 = vsel %vm1004, %v1000, 0
      %v1156 = vsel %vm1004, %v1151, 0
      %1158 = vmatprep.subr.bf16.mxu0 0
      %1159 = vmatpush1.bf16.xpose.msra.mxu0 %v1156
      %1160 = vmatprep.subr.bf16.mxu0 0
      %1161 = vmatpush1.bf16.xpose.msra.mxu0 0
      %1162 = vmatprep.subr.bf16.mxu0 0
      %1163 = vmatpush1.bf16.xpose.msra.mxu0 0
      %1164 = vmatprep.subr.bf16.mxu0 0
      %1165 = vmatpush1.bf16.xpose.msra.mxu0 0
      %1166 = vmatprep.subr.bf16.mxu0 0
      %1167 = vmatpush1.bf16.xpose.msra.mxu0 0
      %1168 = vmatprep.subr.bf16.mxu0 0
      %1169 = vmatpush1.bf16.xpose.msra.mxu0 0
      %1170 = vmatprep.subr.bf16.mxu0 0
      %1171 = vmatpush1.bf16.xpose.msra.mxu0 0
      %1172 = vmatprep.subr.bf16.mxu0 0
      %1173 = vmatpush1.bf16.xpose.msra.mxu0 0
      %1174 = vmatprep.subr.bf16.mxu0 0
      %1175 = vmatpush1.bf16.xpose.msra.mxu0 0
      %1176 = vmatprep.subr.bf16.mxu0 0
      %1177 = vmatpush1.bf16.xpose.msra.mxu0 0
      %1178 = vmatprep.subr.bf16.mxu0 0
      %1179 = vmatpush1.bf16.xpose.msra.mxu0 0
      %1180 = vmatprep.subr.bf16.mxu0 0
      %1181 = vmatpush1.bf16.xpose.msra.mxu0 0
      %1182 = vmatprep.subr.bf16.mxu0 0
      %1183 = vmatpush1.bf16.xpose.msra.mxu0 0
      %1184 = vmatprep.subr.bf16.mxu0 0
      %1185 = vmatpush1.bf16.xpose.msra.mxu0 0
      %1186 = vmatprep.subr.bf16.mxu0 0
      %1187 = vmatpush1.bf16.xpose.msra.mxu0 0
      %1188 = vmatprep.subr.bf16.mxu0 0
      %1189 = vmatpush1.bf16.xpose.msra.mxu0 0
      %1190 = vmatprep.mubr.bf16.mxu0 0
      %1191 = vmatmul.mubr.bf16.gmra.mrb[0].mxu0 %v1153
      %v1192 = vpop.f32.mrb[0].mxu0
      %v1193 = vadd.f32 0.0, %v1192
      %v1194 = vpop.f32.mrb[0].mxu0
      %v1195 = vpop.f32.mrb[0].mxu0
      %v1196 = vpop.f32.mrb[0].mxu0
      %1197 = vdwg.mxu0
      %vm1198 = vcmask 55296
      %v1199 = vsel %vm1198, %v1046, -inf
      %1200 = vmax.xlane.f32.xlu0 %v1199
      %v1201 = vpop.xlane.xlu0 %1200
      %v1202 = vsel %vm1198, %v1095, -inf
      %1203 = vmax.xlane.f32.xlu0 %v1202
      %v1204 = vpop.xlane.xlu0 %1203
      %v1205 = vsel %vm1198, %v1144, -inf
      %1206 = vmax.xlane.f32.xlu0 %v1205
      %v1207 = vpop.xlane.xlu0 %1206
      %v1208 = vsel %vm1198, %v1193, -inf
      %1209 = vmax.xlane.f32.xlu0 %v1208
      %v1210 = vpop.xlane.xlu0 %1209
      %v1211 = vsub.f32 %v1046, %v1201
      %v1212 = vsub.f32 %v1095, %v1204
      %v1213 = vsub.f32 %v1144, %v1207
      %v1214 = vsub.f32 %v1193, %v1210
      %v1215 = vmul.f32 %v1211, 1.442695
      %v1216 = vpow.pop %v1215
      %v1217 = vmul.f32 %v1212, 1.442695
      %v1218 = vpow.pop %v1217
      %v1219 = vmul.f32 %v1213, 1.442695
      %v1220 = vpow.pop %v1219
      %v1221 = vmul.f32 %v1214, 1.442695
      %v1222 = vpow.pop %v1221
      %v1223 = vsel %vm1198, %v1216, 0.0
      %1224 = vadd.xlane.f32.xlu0 %v1223
      %v1225 = vpop.xlane.xlu0 %1224
      %v1226 = vsel %vm1198, %v1218, 0.0
      %1227 = vadd.xlane.f32.xlu0 %v1226
      %v1228 = vpop.xlane.xlu0 %1227
      %v1229 = vsel %vm1198, %v1220, 0.0
      %1230 = vadd.xlane.f32.xlu0 %v1229
      %v1231 = vpop.xlane.xlu0 %1230
      %v1232 = vsel %vm1198, %v1222, 0.0
      %1233 = vadd.xlane.f32.xlu0 %v1232
      %v1234 = vpop.xlane.xlu0 %1233
      %v1235 = vrcp.pop %v1225
      %v1236 = vmul.f32 %v1216, %v1235
      %v1237 = vrcp.pop %v1228
      %v1238 = vmul.f32 %v1218, %v1237
      %v1239 = vrcp.pop %v1231
      %v1240 = vmul.f32 %v1220, %v1239
      %v1241 = vrcp.pop %v1234
      %v1242 = vmul.f32 %v1222, %v1241
      %1243 = vst.msk [vmem:[%s262] sm:$0x7f] %vm1198, %v1236
      %1244 = vst.msk [vmem:[%s262 + $0x8] sm:$0x7f] %vm1198, %v1238
      %1245 = vst.msk [vmem:[%s262 + $0x10] sm:$0x7f] %vm1198, %v1240
      %1246 = vst.msk [vmem:[%s262 + $0x18] sm:$0x7f] %vm1198, %v1242
      %v1247 = vpack.c.bf16 %v1236, %v1236
      %v1248 = vpack.c.bf16 %v1238, %v1238
      %v1249 = vpack.c.bf16 %v1240, %v1240
      %v1250 = vpack.c.bf16 %v1242, %v1242
      %1251 = vrot.lane.b32.xlu0 %v997, 64
      %v1252 = vpop.permute.xlu0 %1251
      %vm1253 = vcmask 56320
      %v1255 = vsel %vm1253, %v1247, 0
      %vm1257 = vcmask 1042432
      %vm1258 = vcmask 1043456
      %v1259 = vsel %vm1257, 4294967295, 65535
      %v1260 = vsel %vm1258, %v1259, 0
      %v1262 = vand.u32 %v1252, %v1260
      %1264 = vmatprep.subr.bf16.mxu0 0
      %1265 = vmatpush1.bf16.msra.mxu0 %v1262
      %1266 = vmatprep.subr.bf16.mxu0 0
      %1267 = vmatpush1.bf16.msra.mxu0 0
      %1268 = vmatprep.subr.bf16.mxu0 0
      %1269 = vmatpush1.bf16.msra.mxu0 0
      %1270 = vmatprep.subr.bf16.mxu0 0
      %1271 = vmatpush1.bf16.msra.mxu0 0
      %1272 = vmatprep.subr.bf16.mxu0 0
      %1273 = vmatpush1.bf16.msra.mxu0 0
      %1274 = vmatprep.subr.bf16.mxu0 0
      %1275 = vmatpush1.bf16.msra.mxu0 0
      %1276 = vmatprep.subr.bf16.mxu0 0
      %1277 = vmatpush1.bf16.msra.mxu0 0
      %1278 = vmatprep.subr.bf16.mxu0 0
      %1279 = vmatpush1.bf16.msra.mxu0 0
      %1280 = vmatprep.subr.bf16.mxu0 0
      %1281 = vmatpush1.bf16.msra.mxu0 0
      %1282 = vmatprep.subr.bf16.mxu0 0
      %1283 = vmatpush1.bf16.msra.mxu0 0
      %1284 = vmatprep.subr.bf16.mxu0 0
      %1285 = vmatpush1.bf16.msra.mxu0 0
      %1286 = vmatprep.subr.bf16.mxu0 0
      %1287 = vmatpush1.bf16.msra.mxu0 0
      %1288 = vmatprep.subr.bf16.mxu0 0
      %1289 = vmatpush1.bf16.msra.mxu0 0
      %1290 = vmatprep.subr.bf16.mxu0 0
      %1291 = vmatpush1.bf16.msra.mxu0 0
      %1292 = vmatprep.subr.bf16.mxu0 0
      %1293 = vmatpush1.bf16.msra.mxu0 0
      %1294 = vmatprep.subr.bf16.mxu0 0
      %1295 = vmatpush1.bf16.msra.mxu0 0
      %1296 = vmatprep.mubr.bf16.mxu0 0
      %1297 = vmatmul.mubr.bf16.gmra.mrb[0].mxu0 %v1255
      %v1298 = vpop.f32.mrb[0].mxu0
      %v1299 = vadd.f32 0.0, %v1298
      %v1300 = vpop.f32.mrb[0].mxu0
      %v1301 = vpop.f32.mrb[0].mxu0
      %v1302 = vpop.f32.mrb[0].mxu0
      %1303 = vdwg.mxu0
      %1304 = vrot.lane.b32.xlu0 %v998, 64
      %v1305 = vpop.permute.xlu0 %1304
      %v1307 = vsel %vm1253, %v1248, 0
      %v1310 = vand.u32 %v1305, %v1260
      %1312 = vmatprep.subr.bf16.mxu0 0
      %1313 = vmatpush1.bf16.msra.mxu0 %v1310
      %1314 = vmatprep.subr.bf16.mxu0 0
      %1315 = vmatpush1.bf16.msra.mxu0 0
      %1316 = vmatprep.subr.bf16.mxu0 0
      %1317 = vmatpush1.bf16.msra.mxu0 0
      %1318 = vmatprep.subr.bf16.mxu0 0
      %1319 = vmatpush1.bf16.msra.mxu0 0
      %1320 = vmatprep.subr.bf16.mxu0 0
      %1321 = vmatpush1.bf16.msra.mxu0 0
      %1322 = vmatprep.subr.bf16.mxu0 0
      %1323 = vmatpush1.bf16.msra.mxu0 0
      %1324 = vmatprep.subr.bf16.mxu0 0
      %1325 = vmatpush1.bf16.msra.mxu0 0
      %1326 = vmatprep.subr.bf16.mxu0 0
      %1327 = vmatpush1.bf16.msra.mxu0 0
      %1328 = vmatprep.subr.bf16.mxu0 0
      %1329 = vmatpush1.bf16.msra.mxu0 0
      %1330 = vmatprep.subr.bf16.mxu0 0
      %1331 = vmatpush1.bf16.msra.mxu0 0
      %1332 = vmatprep.subr.bf16.mxu0 0
      %1333 = vmatpush1.bf16.msra.mxu0 0
      %1334 = vmatprep.subr.bf16.mxu0 0
      %1335 = vmatpush1.bf16.msra.mxu0 0
      %1336 = vmatprep.subr.bf16.mxu0 0
      %1337 = vmatpush1.bf16.msra.mxu0 0
      %1338 = vmatprep.subr.bf16.mxu0 0
      %1339 = vmatpush1.bf16.msra.mxu0 0
      %1340 = vmatprep.subr.bf16.mxu0 0
      %1341 = vmatpush1.bf16.msra.mxu0 0
      %1342 = vmatprep.subr.bf16.mxu0 0
      %1343 = vmatpush1.bf16.msra.mxu0 0
      %1344 = vmatprep.mubr.bf16.mxu0 0
      %1345 = vmatmul.mubr.bf16.gmra.mrb[0].mxu0 %v1307
      %v1346 = vpop.f32.mrb[0].mxu0
      %v1347 = vadd.f32 0.0, %v1346
      %v1348 = vpop.f32.mrb[0].mxu0
      %v1349 = vpop.f32.mrb[0].mxu0
      %v1350 = vpop.f32.mrb[0].mxu0
      %1351 = vdwg.mxu0
      %1352 = vrot.lane.b32.xlu0 %v999, 64
      %v1353 = vpop.permute.xlu0 %1352
      %v1355 = vsel %vm1253, %v1249, 0
      %v1358 = vand.u32 %v1353, %v1260
      %1360 = vmatprep.subr.bf16.mxu0 0
      %1361 = vmatpush1.bf16.msra.mxu0 %v1358
      %1362 = vmatprep.subr.bf16.mxu0 0
      %1363 = vmatpush1.bf16.msra.mxu0 0
      %1364 = vmatprep.subr.bf16.mxu0 0
      %1365 = vmatpush1.bf16.msra.mxu0 0
      %1366 = vmatprep.subr.bf16.mxu0 0
      %1367 = vmatpush1.bf16.msra.mxu0 0
      %1368 = vmatprep.subr.bf16.mxu0 0
      %1369 = vmatpush1.bf16.msra.mxu0 0
      %1370 = vmatprep.subr.bf16.mxu0 0
      %1371 = vmatpush1.bf16.msra.mxu0 0
      %1372 = vmatprep.subr.bf16.mxu0 0
      %1373 = vmatpush1.bf16.msra.mxu0 0
      %1374 = vmatprep.subr.bf16.mxu0 0
      %1375 = vmatpush1.bf16.msra.mxu0 0
      %1376 = vmatprep.subr.bf16.mxu0 0
      %1377 = vmatpush1.bf16.msra.mxu0 0
      %1378 = vmatprep.subr.bf16.mxu0 0
      %1379 = vmatpush1.bf16.msra.mxu0 0
      %1380 = vmatprep.subr.bf16.mxu0 0
      %1381 = vmatpush1.bf16.msra.mxu0 0
      %1382 = vmatprep.subr.bf16.mxu0 0
      %1383 = vmatpush1.bf16.msra.mxu0 0
      %1384 = vmatprep.subr.bf16.mxu0 0
      %1385 = vmatpush1.bf16.msra.mxu0 0
      %1386 = vmatprep.subr.bf16.mxu0 0
      %1387 = vmatpush1.bf16.msra.mxu0 0
      %1388 = vmatprep.subr.bf16.mxu0 0
      %1389 = vmatpush1.bf16.msra.mxu0 0
      %1390 = vmatprep.subr.bf16.mxu0 0
      %1391 = vmatpush1.bf16.msra.mxu0 0
      %1392 = vmatprep.mubr.bf16.mxu0 0
      %1393 = vmatmul.mubr.bf16.gmra.mrb[0].mxu0 %v1355
      %v1394 = vpop.f32.mrb[0].mxu0
      %v1395 = vadd.f32 0.0, %v1394
      %v1396 = vpop.f32.mrb[0].mxu0
      %v1397 = vpop.f32.mrb[0].mxu0
      %v1398 = vpop.f32.mrb[0].mxu0
      %1399 = vdwg.mxu0
      %1400 = vrot.lane.b32.xlu0 %v1000, 64
      %v1401 = vpop.permute.xlu0 %1400
      %v1403 = vsel %vm1253, %v1250, 0
      %v1406 = vand.u32 %v1401, %v1260
      %1408 = vmatprep.subr.bf16.mxu0 0
      %1409 = vmatpush1.bf16.msra.mxu0 %v1406
      %1410 = vmatprep.subr.bf16.mxu0 0
      %1411 = vmatpush1.bf16.msra.mxu0 0
      %1412 = vmatprep.subr.bf16.mxu0 0
      %1413 = vmatpush1.bf16.msra.mxu0 0
      %1414 = vmatprep.subr.bf16.mxu0 0
      %1415 = vmatpush1.bf16.msra.mxu0 0
      %1416 = vmatprep.subr.bf16.mxu0 0
      %1417 = vmatpush1.bf16.msra.mxu0 0
      %1418 = vmatprep.subr.bf16.mxu0 0
      %1419 = vmatpush1.bf16.msra.mxu0 0
      %1420 = vmatprep.subr.bf16.mxu0 0
      %1421 = vmatpush1.bf16.msra.mxu0 0
      %1422 = vmatprep.subr.bf16.mxu0 0
      %1423 = vmatpush1.bf16.msra.mxu0 0
      %1424 = vmatprep.subr.bf16.mxu0 0
      %1425 = vmatpush1.bf16.msra.mxu0 0
      %1426 = vmatprep.subr.bf16.mxu0 0
      %1427 = vmatpush1.bf16.msra.mxu0 0
      %1428 = vmatprep.subr.bf16.mxu0 0
      %1429 = vmatpush1.bf16.msra.mxu0 0
      %1430 = vmatprep.subr.bf16.mxu0 0
      %1431 = vmatpush1.bf16.msra.mxu0 0
      %1432 = vmatprep.subr.bf16.mxu0 0
      %1433 = vmatpush1.bf16.msra.mxu0 0
      %1434 = vmatprep.subr.bf16.mxu0 0
      %1435 = vmatpush1.bf16.msra.mxu0 0
      %1436 = vmatprep.subr.bf16.mxu0 0
      %1437 = vmatpush1.bf16.msra.mxu0 0
      %1438 = vmatprep.subr.bf16.mxu0 0
      %1439 = vmatpush1.bf16.msra.mxu0 0
      %1440 = vmatprep.mubr.bf16.mxu0 0
      %1441 = vmatmul.mubr.bf16.gmra.mrb[0].mxu0 %v1403
      %v1442 = vpop.f32.mrb[0].mxu0
      %v1443 = vadd.f32 0.0, %v1442
      %v1444 = vpop.f32.mrb[0].mxu0
      %v1445 = vpop.f32.mrb[0].mxu0
      %v1446 = vpop.f32.mrb[0].mxu0
      %1447 = vdwg.mxu0
      %1449 = vrot.lane.b32.xlu0 %v1347, 8
      %v1450 = vpop.permute.xlu0 %1449
      %1453 = vrot.lane.b32.xlu0 %v1395, 16
      %v1454 = vpop.permute.xlu0 %1453
      %1457 = vrot.lane.b32.xlu0 %v1443, 24
      %v1458 = vpop.permute.xlu0 %1457
      %v1460 = vsel %vm1004, %v1299, %v1450
      %vm1461 = vcmask 130048
      %v1462 = vsel %vm1461, %v1460, %v1454
      %vm1463 = vcmask 195584
      %v1464 = vsel %vm1463, %v1462, %v1458
      %v1465 = vpack.c.bf16 %v1464, %v1464
      %1466 = vrot.lane.b32.xlu0 %v934, 32
      %v1467 = vpop.permute.xlu0 %1466
      %1468 = vrot.lane.b32.xlu0 %v935, 32
      %v1469 = vpop.permute.xlu0 %1468
      %1473 = vrot.lane.b32.xlu0 %v985, 32
      %v1474 = vpop.permute.xlu0 %1473
      %v1477 = vsel %vm938, %v1465, 0
      %1479 = vmatprep.subr.bf16.mxu0 0
      %1480 = vmatpush1.bf16.msra.mxu0 %v1467
      %1481 = vmatprep.subr.bf16.mxu0 0
      %1482 = vmatpush1.bf16.msra.mxu0 %v1469
      %1483 = vmatprep.subr.bf16.mxu0 0
      %1484 = vmatpush1.bf16.msra.mxu0 0
      %1485 = vmatprep.subr.bf16.mxu0 0
      %1486 = vmatpush1.bf16.msra.mxu0 0
      %1487 = vmatprep.subr.bf16.mxu0 0
      %1488 = vmatpush1.bf16.msra.mxu0 0
      %1489 = vmatprep.subr.bf16.mxu0 0
      %1490 = vmatpush1.bf16.msra.mxu0 0
      %1491 = vmatprep.subr.bf16.mxu0 0
      %1492 = vmatpush1.bf16.msra.mxu0 0
      %1493 = vmatprep.subr.bf16.mxu0 0
      %1494 = vmatpush1.bf16.msra.mxu0 0
      %1495 = vmatprep.subr.bf16.mxu0 0
      %1496 = vmatpush1.bf16.msra.mxu0 0
      %1497 = vmatprep.subr.bf16.mxu0 0
      %1498 = vmatpush1.bf16.msra.mxu0 0
      %1499 = vmatprep.subr.bf16.mxu0 0
      %1500 = vmatpush1.bf16.msra.mxu0 0
      %1501 = vmatprep.subr.bf16.mxu0 0
      %1502 = vmatpush1.bf16.msra.mxu0 0
      %1503 = vmatprep.subr.bf16.mxu0 0
      %1504 = vmatpush1.bf16.msra.mxu0 0
      %1505 = vmatprep.subr.bf16.mxu0 0
      %1506 = vmatpush1.bf16.msra.mxu0 0
      %1507 = vmatprep.subr.bf16.mxu0 0
      %1508 = vmatpush1.bf16.msra.mxu0 0
      %1509 = vmatprep.subr.bf16.mxu0 0
      %1510 = vmatpush1.bf16.msra.mxu0 0
      %1511 = vmatprep.mubr.bf16.mxu0 0
      %1512 = vmatmul.mubr.bf16.gmra.mrb[0].mxu0 %v1477
      %v1513 = vpop.f32.mrb[0].mxu0
      %v1514 = vadd.f32 %v1474, %v1513
      %v1515 = vpop.f32.mrb[0].mxu0
      %v1516 = vpop.f32.mrb[0].mxu0
      %v1517 = vpop.f32.mrb[0].mxu0
      %1518 = vdwg.mxu0
      %1520 = vrot.lane.b32.xlu0 %v921, 64
      %v1521 = vpop.permute.xlu0 %1520
      %v1523 = vadd.f32 %v1514, %v1521
      %vm1524 = vcmask 260096
      %v1525 = vsel %vm1524, %v1523, 0.0
      %1526 = vadd.xlane.f32.xlu0 %v1525
      %v1527 = vpop.xlane.xlu0 %1526
      %v1528 = vrcp.pop 32.0
      %v1529 = vmul.f32 %v1527, %v1528
      %v1530 = vsub.f32 %v1523, %v1529
      %v1531 = vmul.f32 %v1530, %v1530
      %v1532 = vsel %vm1524, %v1531, 0.0
      %1533 = vadd.xlane.f32.xlu0 %v1532
      %v1534 = vpop.xlane.xlu0 %1533
      %v1535 = vmul.f32 %v1534, %v1528
      %v1536 = vadd.f32 %v1535, 1e-05
      %v1537 = vrsqrt.pop %v1536
      %v1538 = vmul.f32 %v1530, %v1537
      %v1539 = vlaneseq
      %v1540 = vshrl.u32 %v1539, 7
      %v1541 = vsub.s32 3, %v1540
      %v1542 = vrot.slane %v264, %v1541
      %v1543 = vmul.f32 %v1538, %v1542
      %1545 = vrot.lane.b32.xlu0 %v1542, 96
      %v1546 = vpop.permute.xlu0 %1545
      %v1548 = vadd.f32 %v1543, %v1546
      %v1549 = vpack.c.bf16 %v1548, %v1548
      %v1550 = vlaneseq
      %v1551 = vshrl.u32 %v1550, 7
      %v1552 = vsub.s32 4, %v1551
      %v1553 = vrot.slane %v264, %v1552
      %v1558 = vunpack.c.l.b16 %v270
      %v1559 = vunpack.c.l.b16 %v271
      %v1560 = vunpack.c.l.b16 %v272
      %v1561 = vunpack.c.l.b16 %v273
      %v1562 = vpack.c.b16 %v1559, %v1558
      %v1563 = vpack.c.b16 %v1561, %v1560
      %v1567 = vsel %vm938, %v1549, 0
      %1569 = vmatprep.subr.bf16.mxu0 0
      %1570 = vmatpush1.bf16.msra.mxu0 %v1562
      %1571 = vmatprep.subr.bf16.mxu0 0
      %1572 = vmatpush1.bf16.msra.mxu0 %v1563
      %1573 = vmatprep.subr.bf16.mxu0 0
      %1574 = vmatpush1.bf16.msra.mxu0 0
      %1575 = vmatprep.subr.bf16.mxu0 0
      %1576 = vmatpush1.bf16.msra.mxu0 0
      %1577 = vmatprep.subr.bf16.mxu0 0
      %1578 = vmatpush1.bf16.msra.mxu0 0
      %1579 = vmatprep.subr.bf16.mxu0 0
      %1580 = vmatpush1.bf16.msra.mxu0 0
      %1581 = vmatprep.subr.bf16.mxu0 0
      %1582 = vmatpush1.bf16.msra.mxu0 0
      %1583 = vmatprep.subr.bf16.mxu0 0
      %1584 = vmatpush1.bf16.msra.mxu0 0
      %1585 = vmatprep.subr.bf16.mxu0 0
      %1586 = vmatpush1.bf16.msra.mxu0 0
      %1587 = vmatprep.subr.bf16.mxu0 0
      %1588 = vmatpush1.bf16.msra.mxu0 0
      %1589 = vmatprep.subr.bf16.mxu0 0
      %1590 = vmatpush1.bf16.msra.mxu0 0
      %1591 = vmatprep.subr.bf16.mxu0 0
      %1592 = vmatpush1.bf16.msra.mxu0 0
      %1593 = vmatprep.subr.bf16.mxu0 0
      %1594 = vmatpush1.bf16.msra.mxu0 0
      %1595 = vmatprep.subr.bf16.mxu0 0
      %1596 = vmatpush1.bf16.msra.mxu0 0
      %1597 = vmatprep.subr.bf16.mxu0 0
      %1598 = vmatpush1.bf16.msra.mxu0 0
      %1599 = vmatprep.subr.bf16.mxu0 0
      %1600 = vmatpush1.bf16.msra.mxu0 0
      %1601 = vmatprep.mubr.bf16.mxu0 0
      %1602 = vmatmul.mubr.bf16.gmra.mrb[0].mxu0 %v1567
      %v1603 = vpop.f32.mrb[0].mxu0
      %v1604 = vadd.f32 %v1553, %v1603
      %v1605 = vpop.f32.mrb[0].mxu0
      %v1606 = vpop.f32.mrb[0].mxu0
      %v1607 = vpop.f32.mrb[0].mxu0
      %1608 = vdwg.mxu0
      %v1609 = vmax.f32 %v1604, 0.0
      %v1610 = vpack.c.bf16 %v1609, %v1609
      %v1611 = vlaneseq
      %v1612 = vshrl.u32 %v1611, 7
      %v1613 = vsub.s32 5, %v1612
      %v1614 = vrot.slane %v264, %v1613
      %v1623 = vunpack.c.l.b16 %v274
      %v1624 = vunpack.c.l.b16 %v275
      %v1625 = vunpack.c.l.b16 %v276
      %v1626 = vunpack.c.l.b16 %v277
      %v1627 = vunpack.c.l.b16 %v278
      %v1628 = vunpack.c.l.b16 %v279
      %v1629 = vunpack.c.l.b16 %v280
      %v1630 = vunpack.c.l.b16 %v281
      %v1631 = vpack.c.b16 %v1624, %v1623
      %v1632 = vpack.c.b16 %v1626, %v1625
      %v1633 = vpack.c.b16 %v1628, %v1627
      %v1634 = vpack.c.b16 %v1630, %v1629
      %vm1639 = vcmask 523264
      %v1641 = vsel %vm1639, %v1610, 0
      %1643 = vmatprep.subr.bf16.mxu0 0
      %1644 = vmatpush1.bf16.msra.mxu0 %v1631
      %1645 = vmatprep.subr.bf16.mxu0 0
      %1646 = vmatpush1.bf16.msra.mxu0 %v1632
      %1647 = vmatprep.subr.bf16.mxu0 0
      %1648 = vmatpush1.bf16.msra.mxu0 %v1633
      %1649 = vmatprep.subr.bf16.mxu0 0
      %1650 = vmatpush1.bf16.msra.mxu0 %v1634
      %1651 = vmatprep.subr.bf16.mxu0 0
      %1652 = vmatpush1.bf16.msra.mxu0 0
      %1653 = vmatprep.subr.bf16.mxu0 0
      %1654 = vmatpush1.bf16.msra.mxu0 0
      %1655 = vmatprep.subr.bf16.mxu0 0
      %1656 = vmatpush1.bf16.msra.mxu0 0
      %1657 = vmatprep.subr.bf16.mxu0 0
      %1658 = vmatpush1.bf16.msra.mxu0 0
      %1659 = vmatprep.subr.bf16.mxu0 0
      %1660 = vmatpush1.bf16.msra.mxu0 0
      %1661 = vmatprep.subr.bf16.mxu0 0
      %1662 = vmatpush1.bf16.msra.mxu0 0
      %1663 = vmatprep.subr.bf16.mxu0 0
      %1664 = vmatpush1.bf16.msra.mxu0 0
      %1665 = vmatprep.subr.bf16.mxu0 0
      %1666 = vmatpush1.bf16.msra.mxu0 0
      %1667 = vmatprep.subr.bf16.mxu0 0
      %1668 = vmatpush1.bf16.msra.mxu0 0
      %1669 = vmatprep.subr.bf16.mxu0 0
      %1670 = vmatpush1.bf16.msra.mxu0 0
      %1671 = vmatprep.subr.bf16.mxu0 0
      %1672 = vmatpush1.bf16.msra.mxu0 0
      %1673 = vmatprep.subr.bf16.mxu0 0
      %1674 = vmatpush1.bf16.msra.mxu0 0
      %1675 = vmatprep.mubr.bf16.mxu0 0
      %1676 = vmatmul.mubr.bf16.gmra.mrb[0].mxu0 %v1641
      %v1677 = vpop.f32.mrb[0].mxu0
      %v1678 = vadd.f32 %v1614, %v1677
      %v1679 = vpop.f32.mrb[0].mxu0
      %v1680 = vpop.f32.mrb[0].mxu0
      %v1681 = vpop.f32.mrb[0].mxu0
      %1682 = vdwg.mxu0
      %v1683 = vadd.f32 %v1678, %v1548
      %v1684 = vsel %vm1524, %v1683, 0.0
      %1685 = vadd.xlane.f32.xlu0 %v1684
      %v1686 = vpop.xlane.xlu0 %1685
      %v1687 = vmul.f32 %v1686, %v1528
      %v1688 = vsub.f32 %v1683, %v1687
      %v1689 = vmul.f32 %v1688, %v1688
      %v1690 = vsel %vm1524, %v1689, 0.0
      %1691 = vadd.xlane.f32.xlu0 %v1690
      %v1692 = vpop.xlane.xlu0 %1691
      %v1693 = vmul.f32 %v1692, %v1528
      %v1694 = vadd.f32 %v1693, 1e-05
      %v1695 = vrsqrt.pop %v1694
      %v1696 = vmul.f32 %v1688, %v1695
      %1697 = vrot.lane.b32.xlu0 %v1542, 64
      %v1698 = vpop.permute.xlu0 %1697
      %v1700 = vmul.f32 %v1696, %v1698
      %1701 = vrot.lane.b32.xlu0 %v1542, 32
      %v1702 = vpop.permute.xlu0 %1701
      %v1704 = vadd.f32 %v1700, %v1702
      %v1705 = vpack.c.bf16 %v1704, %v1704
      %1706 = vrot.lane.b32.xlu0 %v1562, 64
      %v1707 = vpop.permute.xlu0 %1706
      %1708 = vrot.lane.b32.xlu0 %v1563, 64
      %v1709 = vpop.permute.xlu0 %1708
      %1713 = vrot.lane.b32.xlu0 %v1553, 64
      %v1714 = vpop.permute.xlu0 %1713
      %v1717 = vsel %vm938, %v1705, 0
      %1719 = vmatprep.subr.bf16.mxu0 0
      %1720 = vmatpush1.bf16.msra.mxu0 %v1707
      %1721 = vmatprep.subr.bf16.mxu0 0
      %1722 = vmatpush1.bf16.msra.mxu0 %v1709
      %1723 = vmatprep.subr.bf16.mxu0 0
      %1724 = vmatpush1.bf16.msra.mxu0 0
      %1725 = vmatprep.subr.bf16.mxu0 0
      %1726 = vmatpush1.bf16.msra.mxu0 0
      %1727 = vmatprep.subr.bf16.mxu0 0
      %1728 = vmatpush1.bf16.msra.mxu0 0
      %1729 = vmatprep.subr.bf16.mxu0 0
      %1730 = vmatpush1.bf16.msra.mxu0 0
      %1731 = vmatprep.subr.bf16.mxu0 0
      %1732 = vmatpush1.bf16.msra.mxu0 0
      %1733 = vmatprep.subr.bf16.mxu0 0
      %1734 = vmatpush1.bf16.msra.mxu0 0
      %1735 = vmatprep.subr.bf16.mxu0 0
      %1736 = vmatpush1.bf16.msra.mxu0 0
      %1737 = vmatprep.subr.bf16.mxu0 0
      %1738 = vmatpush1.bf16.msra.mxu0 0
      %1739 = vmatprep.subr.bf16.mxu0 0
      %1740 = vmatpush1.bf16.msra.mxu0 0
      %1741 = vmatprep.subr.bf16.mxu0 0
      %1742 = vmatpush1.bf16.msra.mxu0 0
      %1743 = vmatprep.subr.bf16.mxu0 0
      %1744 = vmatpush1.bf16.msra.mxu0 0
      %1745 = vmatprep.subr.bf16.mxu0 0
      %1746 = vmatpush1.bf16.msra.mxu0 0
      %1747 = vmatprep.subr.bf16.mxu0 0
      %1748 = vmatpush1.bf16.msra.mxu0 0
      %1749 = vmatprep.subr.bf16.mxu0 0
      %1750 = vmatpush1.bf16.msra.mxu0 0
      %1751 = vmatprep.mubr.bf16.mxu0 0
      %1752 = vmatmul.mubr.bf16.gmra.mrb[0].mxu0 %v1717
      %v1753 = vpop.f32.mrb[0].mxu0
      %v1754 = vadd.f32 %v1714, %v1753
      %v1755 = vpop.f32.mrb[0].mxu0
      %v1756 = vpop.f32.mrb[0].mxu0
      %v1757 = vpop.f32.mrb[0].mxu0
      %1758 = vdwg.mxu0
      %1760 = vrot.lane.b32.xlu0 %v1754, 64
      %v1761 = vpop.permute.xlu0 %1760
      %v1763 = vsel %vm1639, %v916, %v1761
      %1764 = vst [vmem:[%s257] sm:$0x7f] %v1763
      %p1765 = scmp.lt.s32.totalorder %s18, 1
      %s1766 = scalar_select %p1765, %s18, 1
      %s1767 = smul.addr %s1766, 8
      %s1768 = scalar_lea.vmem %s5, %s1767
      %p1769 = scmp.lt.s32.totalorder %s18, 1
      %s1770 = scalar_select %p1769, %s18, 1
      %s1771 = smul.addr %s1770, 4
      %s1772 = smul.addr %s1771, 8
      %s1773 = scalar_lea.vmem %s6, %s1772
      // Predicated region
      $region41: #{convformer_forward.1} parent=39 // pred_check
        %p1774 = pneg %p146
      $region42: #{convformer_forward.1} parent=39 // pred_check_branch
        %1776 = sbr.rel (%p1774) target = $region44
      $region43: #{convformer_forward.1} parent=39 // pred_region
        _
      $region44: #{convformer_forward.1} parent=39 // pred_fallthru
        _
      // Predicated region
      $region45: #{convformer_forward.1} parent=39 // pred_check
        %p1777 = pneg %p172
      $region46: #{convformer_forward.1} parent=39 // pred_check_branch
        %1779 = sbr.rel (%p1777) target = $region48
      $region47: #{convformer_forward.1} parent=39 // pred_region
        _
      $region48: #{convformer_forward.1} parent=39 // pred_fallthru
        _
    $region40: #{convformer_forward.1} parent=5 // pred_fallthru
      _
    %p1780 = scmp.le.s32.totalorder 2, %s13
    // Predicated region
    $region49: #{convformer_forward.1} parent=5 // pred_check
      %p1781 = pneg %p1780
    $region50: #{convformer_forward.1} parent=5 // pred_check_branch
      %1783 = sbr.rel (%p1781) target = $region52
    $region51: #{convformer_forward.1} parent=5 // pred_region
      %s1784 = ssub.s32 %s13, 2
      // Predicated region
      $region53: #{convformer_forward.1} parent=51 // pred_check
        %p1785 = pneg %p152
      $region54: #{convformer_forward.1} parent=51 // pred_check_branch
        %1787 = sbr.rel (%p1785) target = $region56
      $region55: #{convformer_forward.1} parent=51 // pred_region
        %p1788 = scmp.lt.s32.totalorder %s19, 1
        %s1789 = scalar_select %p1788, %s19, 1
        %s1790 = smul.addr %s1789, 8
        %s1791 = scalar_lea.vmem %s5, %s1790
      $region56: #{convformer_forward.1} parent=51 // pred_fallthru
        _
      // Predicated region
      $region57: #{convformer_forward.1} parent=51 // pred_check
        %p1792 = pneg %p178
      $region58: #{convformer_forward.1} parent=51 // pred_check_branch
        %1794 = sbr.rel (%p1792) target = $region60
      $region59: #{convformer_forward.1} parent=51 // pred_region
        %p1795 = scmp.lt.s32.totalorder %s19, 1
        %s1796 = scalar_select %p1795, %s19, 1
        %s1797 = smul.addr %s1796, 4
        %s1798 = smul.addr %s1797, 8
        %s1799 = scalar_lea.vmem %s6, %s1798
      $region60: #{convformer_forward.1} parent=51 // pred_fallthru
        _
    $region52: #{convformer_forward.1} parent=5 // pred_fallthru
      _
  $region6: #{convformer_forward.1} parent=0 // loop_footer
    %s17 = sadd.s32 1, %s13
  $region7: #{convformer_forward.1} parent=0 // loop_footer_branch
    %12 = sbr.rel target = $region3
  $region8: #{convformer_forward.1} parent=0 // loop_exit
    _

</llo_original>
